<compile_context>
chip_gen: v6e
topology: v6e:2x2x1
jax: 0.10.0
libtpu: 0.0.40
codegen_flags: <defaults>
</compile_context>

<pallas_src>
import functools

import jax
import jax.numpy as jnp
from jax.experimental import pallas as pl
from jax.experimental.pallas import tpu as pltpu


# ----------------------------------------------------------------------------
# In-kernel building block: one LSTM layer + (bias-free) Linear projection.
# Operates on VMEM-resident values; recurrence runs over `seq_axis` of x and
# is fully unrolled (S is small and static).  Returns the block output with
# the recurrence axis leading, i.e. shape (S, N, H).
# ----------------------------------------------------------------------------
def _lstm_linear_block(x, w_ih_t, w_hh_t, w_lin_t, *, seq_axis):
    d0, d1, D = x.shape
    H = w_hh_t.shape[0]
    S = x.shape[seq_axis]               # recurrence length
    N = d1 if seq_axis == 0 else d0     # rows carried through the recurrence

    # Bulk input projection for every position at once: a single
    # (d0*d1, D) @ (D, 4H) MXU call instead of S tiny per-step matmuls.
    xg = jnp.dot(x.reshape(d0 * d1, D), w_ih_t,
                 preferred_element_type=jnp.float32).reshape(d0, d1, 4 * H)

    h = jnp.zeros((N, H), jnp.float32)
    c = jnp.zeros((N, H), jnp.float32)
    hs = []
    # Fully unrolled recurrence (S <= 8 here; all slices below are static).
    # For long sequences switch to lax.fori_loop over a VMEM scratch instead.
    for t in range(S):
        g_x = xg[t] if seq_axis == 0 else xg[:, t, :]           # (N, 4H)
        gates = g_x + jnp.dot(h, w_hh_t, preferred_element_type=jnp.float32)
        # Nonlinearities on the full lane-dense (N, 4H=128) slab (EUP is a
        # free slot); slice afterwards.  PyTorch gate order: i, f, g, o.
        sg = jax.nn.sigmoid(gates)
        th = jnp.tanh(gates)
        c = sg[:, H:2 * H] * c + sg[:, :H] * th[:, 2 * H:3 * H]
        h = sg[:, 3 * H:] * jnp.tanh(c)
        hs.append(h)
    hs = jnp.stack(hs, axis=0)                                  # (S, N, H)

    # Deferred per-block Linear (bias=False): one (S*N, H) @ (H, H) matmul.
    y = jnp.dot(hs.reshape(S * N, H), w_lin_t,
                preferred_element_type=jnp.float32)
    return y.reshape(S, N, H)


# ----------------------------------------------------------------------------
# Single fused kernel: in_layer -> stacked blocks -> out_layer, all in VMEM.
# ----------------------------------------------------------------------------
def _fused_forward_kernel(*args, num_stack):
    n_blocks = 1 + num_stack
    x_ref = args[0]
    w = [tuple(args[1 + 3 * k + j][...] for j in range(3)) for k in range(n_blocks)]
    w_out = args[1 + 3 * n_blocks][...]        # (H, O)
    b_out = args[2 + 3 * n_blocks][...]        # (1, O)
    y_ref = args[3 + 3 * n_blocks]

    # in_layer: nn.LSTM default batch_first=False -> recurrence over axis 0.
    z = _lstm_linear_block(x_ref[...], *w[0], seq_axis=0)        # (T, B, H)

    # Stacked blocks: built batch_first=True but fed seq-major (T, B, H), so
    # (faithful to the PyTorch module) their recurrence runs over the B axis.
    # Each block emits its output recurrence-axis-leading, so only the first
    # stacked block sees its recurrence axis at position 1; afterwards it is
    # already leading -> no transposes anywhere (VMEM or HBM).
    for k in range(1, n_blocks):
        z = _lstm_linear_block(z, *w[k], seq_axis=1 if k == 1 else 0)

    # out_layer (Linear, bias=True) fused into the same kernel: a single
    # lane-dense matmul + one bulk store; no extra HBM round trip of z.
    d0, d1, H = z.shape
    O = w_out.shape[1]
    y = jnp.dot(z.reshape(d0 * d1, H), w_out,
                preferred_element_type=jnp.float32) + b_out
    y_ref[...] = y.reshape(d0, d1, O).astype(y_ref.dtype)


# ----------------------------------------------------------------------------
# One-time parameter preparation (hoisted out of the forward pass).
# ----------------------------------------------------------------------------
def prepare_params(params):
    """Transpose every weight into the (in_features, out_features) layout the
    kernel's matmuls consume, and reshape the output bias to 2D.  Call once."""
    blocks = [tuple(jnp.transpose(wt) for wt in params["in_layer"])]
    blocks += [tuple(jnp.transpose(wt) for wt in blk) for blk in params["stack"]]
    w_out, b_out = params["out_layer"]
    return {
        "blocks": blocks,                    # per block: (D,4H), (H,4H), (H,H)
        "w_out_t": jnp.transpose(w_out),     # (H, O)
        "b_out": b_out.reshape(1, -1),       # (1, O)
    }


# ----------------------------------------------------------------------------
# Forward wrapper: one pallas_call, everything VMEM-resident, no grid.
# ----------------------------------------------------------------------------
def linear_combo_lstm_forward(x, prep):
    """x: (T, B, in_dim) seq-major (the first LSTM is batch_first=False)."""
    T, B, _ = x.shape
    blocks = prep["blocks"]
    num_stack = len(blocks) - 1
    O = prep["w_out_t"].shape[1]

    flat_w = [wt for blk in blocks for wt in blk]
    # With >=1 stacked layer the kernel's last block leaves its recurrence (B)
    # axis leading, so the kernel emits (B, T, O); otherwise (T, B, O).
    out_phys = (B, T, O) if num_stack >= 1 else (T, B, O)
    n_inputs = 1 + len(flat_w) + 2

    y = pl.pallas_call(
        functools.partial(_fused_forward_kernel, num_stack=num_stack),
        out_shape=jax.ShapeDtypeStruct(out_phys, jnp.float32),
        # Everything is tiny: keep inputs, weights and output fully in VMEM
        # and invoke the kernel exactly once (no grid, no per-step pipeline).
        in_specs=[pl.BlockSpec(memory_space=pltpu.MemorySpace.VMEM)
                  for _ in range(n_inputs)],
        out_specs=pl.BlockSpec(memory_space=pltpu.MemorySpace.VMEM),
    )(x, *flat_w, prep["w_out_t"], prep["b_out"])

    if num_stack >= 1:
        # (B, T, O) -> (T, B, O): a T*B*O-element (192-byte here) layout fixup.
        # The full (T, B, H) activations never leave VMEM.
        y = jnp.transpose(y, (1, 0, 2))
    return y


# ----------------------------------------------------------------------------
# Pure-JAX reference (for validation).
# ----------------------------------------------------------------------------
def _lstm_ref(x, w_ih, w_hh):
    _, B, _ = x.shape
    H = w_hh.shape[1]

    def step(carry, x_t):
        h, c = carry
        gates = x_t @ w_ih.T + h @ w_hh.T
        i, f, g, o = jnp.split(gates, 4, axis=-1)
        c = jax.nn.sigmoid(f) * c + jax.nn.sigmoid(i) * jnp.tanh(g)
        h = jax.nn.sigmoid(o) * jnp.tanh(c)
        return (h, c), h

    (_, _), ys = jax.lax.scan(step, (jnp.zeros((B, H)), jnp.zeros((B, H))), x)
    return ys


def _forward_ref(x, params):
    w_ih, w_hh, w_lin = params["in_layer"]
    z = _lstm_ref(x, w_ih, w_hh) @ w_lin.T
    for (w_ih, w_hh, w_lin) in params["stack"]:
        zt = jnp.transpose(z, (1, 0, 2))
        zt = _lstm_ref(zt, w_ih, w_hh) @ w_lin.T
        z = jnp.transpose(zt, (1, 0, 2))
    w_out, b_out = params["out_layer"]
    return z @ w_out.T + b_out


# ----------------------------------------------------------------------------
# Deterministic parameter init (shapes per module __init__; synthetic values).
# ----------------------------------------------------------------------------
def init_params(key, in_dim, hidden_dim, num_lstm_layers, out_dim):
    scale = 1.0 / jnp.sqrt(hidden_dim)

    def u(k, shape):
        return jax.random.uniform(k, shape, jnp.float32, -scale, scale)

    keys = jax.random.split(key, 3 + 3 * (num_lstm_layers - 1) + 2)
    ki = iter(range(len(keys)))

    params = {
        "in_layer": (
            u(keys[next(ki)], (4 * hidden_dim, in_dim)),      # LSTM W_ih
            u(keys[next(ki)], (4 * hidden_dim, hidden_dim)),  # LSTM W_hh
            u(keys[next(ki)], (hidden_dim, hidden_dim)),      # Linear (no bias)
        ),
        "stack": [
            (
                u(keys[next(ki)], (4 * hidden_dim, hidden_dim)),
                u(keys[next(ki)], (4 * hidden_dim, hidden_dim)),
                u(keys[next(ki)], (hidden_dim, hidden_dim)),
            )
            for _ in range(num_lstm_layers - 1)
        ],
        "out_layer": (
            u(keys[next(ki)], (out_dim, hidden_dim)),          # Linear W (bias=True)
            u(keys[next(ki)], (out_dim,)),                     # Linear b
        ),
    }
    return params


if __name__ == "__main__":
    # Small shapes consistent with the module's forward.
    in_dim, hidden_dim, num_lstm_layers, out_dim = 4, 32, 3, 3
    T, B = 8, 2

    key = jax.random.PRNGKey(0)
    kx, kp = jax.random.split(key)
    x = jax.random.normal(kx, (T, B, in_dim), jnp.float32)   # seq-major input
    params = init_params(kp, in_dim, hidden_dim, num_lstm_layers, out_dim)
    prep = prepare_params(params)    # one-time weight prep, not per-forward

    fwd = jax.jit(linear_combo_lstm_forward)
    y = jax.block_until_ready(fwd(x, prep))

    y_ref = _forward_ref(x, params)
    assert y.shape == (T, B, out_dim)
    assert jnp.allclose(y, y_ref, rtol=5e-3, atol=5e-3), "mismatch vs JAX reference"

    print("KERNEL_OK")
</pallas_src>

<mosaic_0001>
module attributes {stable_mosaic.version = 11 : i64} {
  func.func @_fused_forward_kernel(%arg0: memref<8x2x4xf32, #tpu.memory_space<vmem>>, %arg1: memref<4x128xf32, #tpu.memory_space<vmem>>, %arg2: memref<32x128xf32, #tpu.memory_space<vmem>>, %arg3: memref<32x32xf32, #tpu.memory_space<vmem>>, %arg4: memref<32x128xf32, #tpu.memory_space<vmem>>, %arg5: memref<32x128xf32, #tpu.memory_space<vmem>>, %arg6: memref<32x32xf32, #tpu.memory_space<vmem>>, %arg7: memref<32x128xf32, #tpu.memory_space<vmem>>, %arg8: memref<32x128xf32, #tpu.memory_space<vmem>>, %arg9: memref<32x32xf32, #tpu.memory_space<vmem>>, %arg10: memref<32x3xf32, #tpu.memory_space<vmem>>, %arg11: memref<1x3xf32, #tpu.memory_space<vmem>>, %arg12: memref<2x8x3xf32, #tpu.memory_space<vmem>>) attributes {dimension_semantics = [], scalar_prefetch = 0 : i64, scratch_operands = 0 : i64, tpu.core_type = #tpu.core_type<tc>} {
    %c0 = arith.constant 0 : index
    %c0_0 = arith.constant 0 : index
    %0 = vector.load %arg1[%c0, %c0_0] : memref<4x128xf32, #tpu.memory_space<vmem>>, vector<4x128xf32>
    %c0_1 = arith.constant 0 : index
    %c0_2 = arith.constant 0 : index
    %1 = vector.load %arg2[%c0_1, %c0_2] : memref<32x128xf32, #tpu.memory_space<vmem>>, vector<32x128xf32>
    %c0_3 = arith.constant 0 : index
    %c0_4 = arith.constant 0 : index
    %2 = vector.load %arg3[%c0_3, %c0_4] : memref<32x32xf32, #tpu.memory_space<vmem>>, vector<32x32xf32>
    %c0_5 = arith.constant 0 : index
    %c0_6 = arith.constant 0 : index
    %3 = vector.load %arg4[%c0_5, %c0_6] : memref<32x128xf32, #tpu.memory_space<vmem>>, vector<32x128xf32>
    %c0_7 = arith.constant 0 : index
    %c0_8 = arith.constant 0 : index
    %4 = vector.load %arg5[%c0_7, %c0_8] : memref<32x128xf32, #tpu.memory_space<vmem>>, vector<32x128xf32>
    %c0_9 = arith.constant 0 : index
    %c0_10 = arith.constant 0 : index
    %5 = vector.load %arg6[%c0_9, %c0_10] : memref<32x32xf32, #tpu.memory_space<vmem>>, vector<32x32xf32>
    %c0_11 = arith.constant 0 : index
    %c0_12 = arith.constant 0 : index
    %6 = vector.load %arg7[%c0_11, %c0_12] : memref<32x128xf32, #tpu.memory_space<vmem>>, vector<32x128xf32>
    %c0_13 = arith.constant 0 : index
    %c0_14 = arith.constant 0 : index
    %7 = vector.load %arg8[%c0_13, %c0_14] : memref<32x128xf32, #tpu.memory_space<vmem>>, vector<32x128xf32>
    %c0_15 = arith.constant 0 : index
    %c0_16 = arith.constant 0 : index
    %8 = vector.load %arg9[%c0_15, %c0_16] : memref<32x32xf32, #tpu.memory_space<vmem>>, vector<32x32xf32>
    %c0_17 = arith.constant 0 : index
    %c0_18 = arith.constant 0 : index
    %9 = vector.load %arg10[%c0_17, %c0_18] : memref<32x3xf32, #tpu.memory_space<vmem>>, vector<32x3xf32>
    %c0_19 = arith.constant 0 : index
    %c0_20 = arith.constant 0 : index
    %10 = vector.load %arg11[%c0_19, %c0_20] : memref<1x3xf32, #tpu.memory_space<vmem>>, vector<1x3xf32>
    %c0_21 = arith.constant 0 : index
    %c0_22 = arith.constant 0 : index
    %c0_23 = arith.constant 0 : index
    %11 = vector.load %arg0[%c0_21, %c0_22, %c0_23] : memref<8x2x4xf32, #tpu.memory_space<vmem>>, vector<8x2x4xf32>
    %12 = vector.shape_cast %11 : vector<8x2x4xf32> to vector<16x4xf32>
    %cst = arith.constant dense<0.000000e+00> : vector<16x128xf32>
    %13 = tpu.matmul %12, %0, %cst {dimension_numbers = #tpu.dot_dimension_numbers<[1], [0], [0], [1], [0, 0, 1, 1], [], []>} : vector<16x4xf32>, vector<4x128xf32>, vector<16x128xf32> -> vector<16x128xf32>
    %14 = vector.shape_cast %13 : vector<16x128xf32> to vector<8x2x128xf32>
    %cst_24 = arith.constant 0.000000e+00 : f32
    %15 = vector.broadcast %cst_24 : f32 to vector<2x32xf32>
    %cst_25 = arith.constant 0.000000e+00 : f32
    %16 = vector.broadcast %cst_25 : f32 to vector<2x32xf32>
    %17 = vector.extract_strided_slice %14 {offsets = [0, 0, 0], sizes = [1, 2, 128], strides = [1, 1, 1]} : vector<8x2x128xf32> to vector<1x2x128xf32>
    %18 = vector.shape_cast %17 : vector<1x2x128xf32> to vector<2x128xf32>
    %cst_26 = arith.constant dense<0.000000e+00> : vector<2x128xf32>
    %19 = tpu.matmul %15, %1, %cst_26 {dimension_numbers = #tpu.dot_dimension_numbers<[1], [0], [0], [1], [0, 0, 1, 1], [], []>} : vector<2x32xf32>, vector<32x128xf32>, vector<2x128xf32> -> vector<2x128xf32>
    %20 = arith.addf %18, %19 : vector<2x128xf32>
    %21 = arith.negf %20 : vector<2x128xf32>
    %22 = math.exp %21 : vector<2x128xf32>
    %cst_27 = arith.constant 1.000000e+00 : f32
    %23 = vector.broadcast %cst_27 : f32 to vector<2x128xf32>
    %24 = arith.addf %23, %22 : vector<2x128xf32>
    %25 = arith.divf %23, %24 : vector<2x128xf32>
    %26 = math.tanh %20 : vector<2x128xf32>
    %27 = vector.extract_strided_slice %25 {offsets = [0, 32], sizes = [2, 32], strides = [1, 1]} : vector<2x128xf32> to vector<2x32xf32>
    %28 = arith.mulf %27, %16 : vector<2x32xf32>
    %29 = vector.extract_strided_slice %25 {offsets = [0, 0], sizes = [2, 32], strides = [1, 1]} : vector<2x128xf32> to vector<2x32xf32>
    %30 = vector.extract_strided_slice %26 {offsets = [0, 64], sizes = [2, 32], strides = [1, 1]} : vector<2x128xf32> to vector<2x32xf32>
    %31 = arith.mulf %29, %30 : vector<2x32xf32>
    %32 = arith.addf %28, %31 : vector<2x32xf32>
    %33 = vector.extract_strided_slice %25 {offsets = [0, 96], sizes = [2, 32], strides = [1, 1]} : vector<2x128xf32> to vector<2x32xf32>
    %34 = math.tanh %32 : vector<2x32xf32>
    %35 = arith.mulf %33, %34 : vector<2x32xf32>
    %36 = vector.extract_strided_slice %14 {offsets = [1, 0, 0], sizes = [1, 2, 128], strides = [1, 1, 1]} : vector<8x2x128xf32> to vector<1x2x128xf32>
    %37 = vector.shape_cast %36 : vector<1x2x128xf32> to vector<2x128xf32>
    %cst_28 = arith.constant dense<0.000000e+00> : vector<2x128xf32>
    %38 = tpu.matmul %35, %1, %cst_28 {dimension_numbers = #tpu.dot_dimension_numbers<[1], [0], [0], [1], [0, 0, 1, 1], [], []>} : vector<2x32xf32>, vector<32x128xf32>, vector<2x128xf32> -> vector<2x128xf32>
    %39 = arith.addf %37, %38 : vector<2x128xf32>
    %40 = arith.negf %39 : vector<2x128xf32>
    %41 = math.exp %40 : vector<2x128xf32>
    %cst_29 = arith.constant 1.000000e+00 : f32
    %42 = vector.broadcast %cst_29 : f32 to vector<2x128xf32>
    %43 = arith.addf %42, %41 : vector<2x128xf32>
    %44 = arith.divf %42, %43 : vector<2x128xf32>
    %45 = math.tanh %39 : vector<2x128xf32>
    %46 = vector.extract_strided_slice %44 {offsets = [0, 32], sizes = [2, 32], strides = [1, 1]} : vector<2x128xf32> to vector<2x32xf32>
    %47 = arith.mulf %46, %32 : vector<2x32xf32>
    %48 = vector.extract_strided_slice %44 {offsets = [0, 0], sizes = [2, 32], strides = [1, 1]} : vector<2x128xf32> to vector<2x32xf32>
    %49 = vector.extract_strided_slice %45 {offsets = [0, 64], sizes = [2, 32], strides = [1, 1]} : vector<2x128xf32> to vector<2x32xf32>
    %50 = arith.mulf %48, %49 : vector<2x32xf32>
    %51 = arith.addf %47, %50 : vector<2x32xf32>
    %52 = vector.extract_strided_slice %44 {offsets = [0, 96], sizes = [2, 32], strides = [1, 1]} : vector<2x128xf32> to vector<2x32xf32>
    %53 = math.tanh %51 : vector<2x32xf32>
    %54 = arith.mulf %52, %53 : vector<2x32xf32>
    %55 = vector.extract_strided_slice %14 {offsets = [2, 0, 0], sizes = [1, 2, 128], strides = [1, 1, 1]} : vector<8x2x128xf32> to vector<1x2x128xf32>
    %56 = vector.shape_cast %55 : vector<1x2x128xf32> to vector<2x128xf32>
    %cst_30 = arith.constant dense<0.000000e+00> : vector<2x128xf32>
    %57 = tpu.matmul %54, %1, %cst_30 {dimension_numbers = #tpu.dot_dimension_numbers<[1], [0], [0], [1], [0, 0, 1, 1], [], []>} : vector<2x32xf32>, vector<32x128xf32>, vector<2x128xf32> -> vector<2x128xf32>
    %58 = arith.addf %56, %57 : vector<2x128xf32>
    %59 = arith.negf %58 : vector<2x128xf32>
    %60 = math.exp %59 : vector<2x128xf32>
    %cst_31 = arith.constant 1.000000e+00 : f32
    %61 = vector.broadcast %cst_31 : f32 to vector<2x128xf32>
    %62 = arith.addf %61, %60 : vector<2x128xf32>
    %63 = arith.divf %61, %62 : vector<2x128xf32>
    %64 = math.tanh %58 : vector<2x128xf32>
    %65 = vector.extract_strided_slice %63 {offsets = [0, 32], sizes = [2, 32], strides = [1, 1]} : vector<2x128xf32> to vector<2x32xf32>
    %66 = arith.mulf %65, %51 : vector<2x32xf32>
    %67 = vector.extract_strided_slice %63 {offsets = [0, 0], sizes = [2, 32], strides = [1, 1]} : vector<2x128xf32> to vector<2x32xf32>
    %68 = vector.extract_strided_slice %64 {offsets = [0, 64], sizes = [2, 32], strides = [1, 1]} : vector<2x128xf32> to vector<2x32xf32>
    %69 = arith.mulf %67, %68 : vector<2x32xf32>
    %70 = arith.addf %66, %69 : vector<2x32xf32>
    %71 = vector.extract_strided_slice %63 {offsets = [0, 96], sizes = [2, 32], strides = [1, 1]} : vector<2x128xf32> to vector<2x32xf32>
    %72 = math.tanh %70 : vector<2x32xf32>
    %73 = arith.mulf %71, %72 : vector<2x32xf32>
    %74 = vector.extract_strided_slice %14 {offsets = [3, 0, 0], sizes = [1, 2, 128], strides = [1, 1, 1]} : vector<8x2x128xf32> to vector<1x2x128xf32>
    %75 = vector.shape_cast %74 : vector<1x2x128xf32> to vector<2x128xf32>
    %cst_32 = arith.constant dense<0.000000e+00> : vector<2x128xf32>
    %76 = tpu.matmul %73, %1, %cst_32 {dimension_numbers = #tpu.dot_dimension_numbers<[1], [0], [0], [1], [0, 0, 1, 1], [], []>} : vector<2x32xf32>, vector<32x128xf32>, vector<2x128xf32> -> vector<2x128xf32>
    %77 = arith.addf %75, %76 : vector<2x128xf32>
    %78 = arith.negf %77 : vector<2x128xf32>
    %79 = math.exp %78 : vector<2x128xf32>
    %cst_33 = arith.constant 1.000000e+00 : f32
    %80 = vector.broadcast %cst_33 : f32 to vector<2x128xf32>
    %81 = arith.addf %80, %79 : vector<2x128xf32>
    %82 = arith.divf %80, %81 : vector<2x128xf32>
    %83 = math.tanh %77 : vector<2x128xf32>
    %84 = vector.extract_strided_slice %82 {offsets = [0, 32], sizes = [2, 32], strides = [1, 1]} : vector<2x128xf32> to vector<2x32xf32>
    %85 = arith.mulf %84, %70 : vector<2x32xf32>
    %86 = vector.extract_strided_slice %82 {offsets = [0, 0], sizes = [2, 32], strides = [1, 1]} : vector<2x128xf32> to vector<2x32xf32>
    %87 = vector.extract_strided_slice %83 {offsets = [0, 64], sizes = [2, 32], strides = [1, 1]} : vector<2x128xf32> to vector<2x32xf32>
    %88 = arith.mulf %86, %87 : vector<2x32xf32>
    %89 = arith.addf %85, %88 : vector<2x32xf32>
    %90 = vector.extract_strided_slice %82 {offsets = [0, 96], sizes = [2, 32], strides = [1, 1]} : vector<2x128xf32> to vector<2x32xf32>
    %91 = math.tanh %89 : vector<2x32xf32>
    %92 = arith.mulf %90, %91 : vector<2x32xf32>
    %93 = vector.extract_strided_slice %14 {offsets = [4, 0, 0], sizes = [1, 2, 128], strides = [1, 1, 1]} : vector<8x2x128xf32> to vector<1x2x128xf32>
    %94 = vector.shape_cast %93 : vector<1x2x128xf32> to vector<2x128xf32>
    %cst_34 = arith.constant dense<0.000000e+00> : vector<2x128xf32>
    %95 = tpu.matmul %92, %1, %cst_34 {dimension_numbers = #tpu.dot_dimension_numbers<[1], [0], [0], [1], [0, 0, 1, 1], [], []>} : vector<2x32xf32>, vector<32x128xf32>, vector<2x128xf32> -> vector<2x128xf32>
    %96 = arith.addf %94, %95 : vector<2x128xf32>
    %97 = arith.negf %96 : vector<2x128xf32>
    %98 = math.exp %97 : vector<2x128xf32>
    %cst_35 = arith.constant 1.000000e+00 : f32
    %99 = vector.broadcast %cst_35 : f32 to vector<2x128xf32>
    %100 = arith.addf %99, %98 : vector<2x128xf32>
    %101 = arith.divf %99, %100 : vector<2x128xf32>
    %102 = math.tanh %96 : vector<2x128xf32>
    %103 = vector.extract_strided_slice %101 {offsets = [0, 32], sizes = [2, 32], strides = [1, 1]} : vector<2x128xf32> to vector<2x32xf32>
    %104 = arith.mulf %103, %89 : vector<2x32xf32>
    %105 = vector.extract_strided_slice %101 {offsets = [0, 0], sizes = [2, 32], strides = [1, 1]} : vector<2x128xf32> to vector<2x32xf32>
    %106 = vector.extract_strided_slice %102 {offsets = [0, 64], sizes = [2, 32], strides = [1, 1]} : vector<2x128xf32> to vector<2x32xf32>
    %107 = arith.mulf %105, %106 : vector<2x32xf32>
    %108 = arith.addf %104, %107 : vector<2x32xf32>
    %109 = vector.extract_strided_slice %101 {offsets = [0, 96], sizes = [2, 32], strides = [1, 1]} : vector<2x128xf32> to vector<2x32xf32>
    %110 = math.tanh %108 : vector<2x32xf32>
    %111 = arith.mulf %109, %110 : vector<2x32xf32>
    %112 = vector.extract_strided_slice %14 {offsets = [5, 0, 0], sizes = [1, 2, 128], strides = [1, 1, 1]} : vector<8x2x128xf32> to vector<1x2x128xf32>
    %113 = vector.shape_cast %112 : vector<1x2x128xf32> to vector<2x128xf32>
    %cst_36 = arith.constant dense<0.000000e+00> : vector<2x128xf32>
    %114 = tpu.matmul %111, %1, %cst_36 {dimension_numbers = #tpu.dot_dimension_numbers<[1], [0], [0], [1], [0, 0, 1, 1], [], []>} : vector<2x32xf32>, vector<32x128xf32>, vector<2x128xf32> -> vector<2x128xf32>
    %115 = arith.addf %113, %114 : vector<2x128xf32>
    %116 = arith.negf %115 : vector<2x128xf32>
    %117 = math.exp %116 : vector<2x128xf32>
    %cst_37 = arith.constant 1.000000e+00 : f32
    %118 = vector.broadcast %cst_37 : f32 to vector<2x128xf32>
    %119 = arith.addf %118, %117 : vector<2x128xf32>
    %120 = arith.divf %118, %119 : vector<2x128xf32>
    %121 = math.tanh %115 : vector<2x128xf32>
    %122 = vector.extract_strided_slice %120 {offsets = [0, 32], sizes = [2, 32], strides = [1, 1]} : vector<2x128xf32> to vector<2x32xf32>
    %123 = arith.mulf %122, %108 : vector<2x32xf32>
    %124 = vector.extract_strided_slice %120 {offsets = [0, 0], sizes = [2, 32], strides = [1, 1]} : vector<2x128xf32> to vector<2x32xf32>
    %125 = vector.extract_strided_slice %121 {offsets = [0, 64], sizes = [2, 32], strides = [1, 1]} : vector<2x128xf32> to vector<2x32xf32>
    %126 = arith.mulf %124, %125 : vector<2x32xf32>
    %127 = arith.addf %123, %126 : vector<2x32xf32>
    %128 = vector.extract_strided_slice %120 {offsets = [0, 96], sizes = [2, 32], strides = [1, 1]} : vector<2x128xf32> to vector<2x32xf32>
    %129 = math.tanh %127 : vector<2x32xf32>
    %130 = arith.mulf %128, %129 : vector<2x32xf32>
    %131 = vector.extract_strided_slice %14 {offsets = [6, 0, 0], sizes = [1, 2, 128], strides = [1, 1, 1]} : vector<8x2x128xf32> to vector<1x2x128xf32>
    %132 = vector.shape_cast %131 : vector<1x2x128xf32> to vector<2x128xf32>
    %cst_38 = arith.constant dense<0.000000e+00> : vector<2x128xf32>
    %133 = tpu.matmul %130, %1, %cst_38 {dimension_numbers = #tpu.dot_dimension_numbers<[1], [0], [0], [1], [0, 0, 1, 1], [], []>} : vector<2x32xf32>, vector<32x128xf32>, vector<2x128xf32> -> vector<2x128xf32>
    %134 = arith.addf %132, %133 : vector<2x128xf32>
    %135 = arith.negf %134 : vector<2x128xf32>
    %136 = math.exp %135 : vector<2x128xf32>
    %cst_39 = arith.constant 1.000000e+00 : f32
    %137 = vector.broadcast %cst_39 : f32 to vector<2x128xf32>
    %138 = arith.addf %137, %136 : vector<2x128xf32>
    %139 = arith.divf %137, %138 : vector<2x128xf32>
    %140 = math.tanh %134 : vector<2x128xf32>
    %141 = vector.extract_strided_slice %139 {offsets = [0, 32], sizes = [2, 32], strides = [1, 1]} : vector<2x128xf32> to vector<2x32xf32>
    %142 = arith.mulf %141, %127 : vector<2x32xf32>
    %143 = vector.extract_strided_slice %139 {offsets = [0, 0], sizes = [2, 32], strides = [1, 1]} : vector<2x128xf32> to vector<2x32xf32>
    %144 = vector.extract_strided_slice %140 {offsets = [0, 64], sizes = [2, 32], strides = [1, 1]} : vector<2x128xf32> to vector<2x32xf32>
    %145 = arith.mulf %143, %144 : vector<2x32xf32>
    %146 = arith.addf %142, %145 : vector<2x32xf32>
    %147 = vector.extract_strided_slice %139 {offsets = [0, 96], sizes = [2, 32], strides = [1, 1]} : vector<2x128xf32> to vector<2x32xf32>
    %148 = math.tanh %146 : vector<2x32xf32>
    %149 = arith.mulf %147, %148 : vector<2x32xf32>
    %150 = vector.extract_strided_slice %14 {offsets = [7, 0, 0], sizes = [1, 2, 128], strides = [1, 1, 1]} : vector<8x2x128xf32> to vector<1x2x128xf32>
    %151 = vector.shape_cast %150 : vector<1x2x128xf32> to vector<2x128xf32>
    %cst_40 = arith.constant dense<0.000000e+00> : vector<2x128xf32>
    %152 = tpu.matmul %149, %1, %cst_40 {dimension_numbers = #tpu.dot_dimension_numbers<[1], [0], [0], [1], [0, 0, 1, 1], [], []>} : vector<2x32xf32>, vector<32x128xf32>, vector<2x128xf32> -> vector<2x128xf32>
    %153 = arith.addf %151, %152 : vector<2x128xf32>
    %154 = arith.negf %153 : vector<2x128xf32>
    %155 = math.exp %154 : vector<2x128xf32>
    %cst_41 = arith.constant 1.000000e+00 : f32
    %156 = vector.broadcast %cst_41 : f32 to vector<2x128xf32>
    %157 = arith.addf %156, %155 : vector<2x128xf32>
    %158 = arith.divf %156, %157 : vector<2x128xf32>
    %159 = math.tanh %153 : vector<2x128xf32>
    %160 = vector.extract_strided_slice %158 {offsets = [0, 32], sizes = [2, 32], strides = [1, 1]} : vector<2x128xf32> to vector<2x32xf32>
    %161 = arith.mulf %160, %146 : vector<2x32xf32>
    %162 = vector.extract_strided_slice %158 {offsets = [0, 0], sizes = [2, 32], strides = [1, 1]} : vector<2x128xf32> to vector<2x32xf32>
    %163 = vector.extract_strided_slice %159 {offsets = [0, 64], sizes = [2, 32], strides = [1, 1]} : vector<2x128xf32> to vector<2x32xf32>
    %164 = arith.mulf %162, %163 : vector<2x32xf32>
    %165 = arith.addf %161, %164 : vector<2x32xf32>
    %166 = vector.extract_strided_slice %158 {offsets = [0, 96], sizes = [2, 32], strides = [1, 1]} : vector<2x128xf32> to vector<2x32xf32>
    %167 = math.tanh %165 : vector<2x32xf32>
    %168 = arith.mulf %166, %167 : vector<2x32xf32>
    %169 = vector.shape_cast %35 : vector<2x32xf32> to vector<1x2x32xf32>
    %170 = vector.shape_cast %54 : vector<2x32xf32> to vector<1x2x32xf32>
    %171 = vector.shape_cast %73 : vector<2x32xf32> to vector<1x2x32xf32>
    %172 = vector.shape_cast %92 : vector<2x32xf32> to vector<1x2x32xf32>
    %173 = vector.shape_cast %111 : vector<2x32xf32> to vector<1x2x32xf32>
    %174 = vector.shape_cast %130 : vector<2x32xf32> to vector<1x2x32xf32>
    %175 = vector.shape_cast %149 : vector<2x32xf32> to vector<1x2x32xf32>
    %176 = vector.shape_cast %168 : vector<2x32xf32> to vector<1x2x32xf32>
    %177 = tpu.concatenate %169, %170, %171, %172, %173, %174, %175, %176 in 0 : vector<1x2x32xf32>, vector<1x2x32xf32>, vector<1x2x32xf32>, vector<1x2x32xf32>, vector<1x2x32xf32>, vector<1x2x32xf32>, vector<1x2x32xf32>, vector<1x2x32xf32> -> vector<8x2x32xf32>
    %178 = vector.shape_cast %177 : vector<8x2x32xf32> to vector<16x32xf32>
    %cst_42 = arith.constant dense<0.000000e+00> : vector<16x32xf32>
    %179 = tpu.matmul %178, %2, %cst_42 {dimension_numbers = #tpu.dot_dimension_numbers<[1], [0], [0], [1], [0, 0, 1, 1], [], []>} : vector<16x32xf32>, vector<32x32xf32>, vector<16x32xf32> -> vector<16x32xf32>
    %180 = vector.shape_cast %179 : vector<16x32xf32> to vector<8x2x32xf32>
    %181 = vector.shape_cast %180 : vector<8x2x32xf32> to vector<16x32xf32>
    %cst_43 = arith.constant dense<0.000000e+00> : vector<16x128xf32>
    %182 = tpu.matmul %181, %3, %cst_43 {dimension_numbers = #tpu.dot_dimension_numbers<[1], [0], [0], [1], [0, 0, 1, 1], [], []>} : vector<16x32xf32>, vector<32x128xf32>, vector<16x128xf32> -> vector<16x128xf32>
    %183 = vector.shape_cast %182 : vector<16x128xf32> to vector<8x2x128xf32>
    %cst_44 = arith.constant 0.000000e+00 : f32
    %184 = vector.broadcast %cst_44 : f32 to vector<8x32xf32>
    %cst_45 = arith.constant 0.000000e+00 : f32
    %185 = vector.broadcast %cst_45 : f32 to vector<8x32xf32>
    %186 = vector.extract_strided_slice %183 {offsets = [0, 0, 0], sizes = [8, 1, 128], strides = [1, 1, 1]} : vector<8x2x128xf32> to vector<8x1x128xf32>
    %187 = vector.shape_cast %186 : vector<8x1x128xf32> to vector<8x128xf32>
    %cst_46 = arith.constant dense<0.000000e+00> : vector<8x128xf32>
    %188 = tpu.matmul %184, %4, %cst_46 {dimension_numbers = #tpu.dot_dimension_numbers<[1], [0], [0], [1], [0, 0, 1, 1], [], []>} : vector<8x32xf32>, vector<32x128xf32>, vector<8x128xf32> -> vector<8x128xf32>
    %189 = arith.addf %187, %188 : vector<8x128xf32>
    %190 = arith.negf %189 : vector<8x128xf32>
    %191 = math.exp %190 : vector<8x128xf32>
    %cst_47 = arith.constant 1.000000e+00 : f32
    %192 = vector.broadcast %cst_47 : f32 to vector<8x128xf32>
    %193 = arith.addf %192, %191 : vector<8x128xf32>
    %194 = arith.divf %192, %193 : vector<8x128xf32>
    %195 = math.tanh %189 : vector<8x128xf32>
    %196 = vector.extract_strided_slice %194 {offsets = [0, 32], sizes = [8, 32], strides = [1, 1]} : vector<8x128xf32> to vector<8x32xf32>
    %197 = arith.mulf %196, %185 : vector<8x32xf32>
    %198 = vector.extract_strided_slice %194 {offsets = [0, 0], sizes = [8, 32], strides = [1, 1]} : vector<8x128xf32> to vector<8x32xf32>
    %199 = vector.extract_strided_slice %195 {offsets = [0, 64], sizes = [8, 32], strides = [1, 1]} : vector<8x128xf32> to vector<8x32xf32>
    %200 = arith.mulf %198, %199 : vector<8x32xf32>
    %201 = arith.addf %197, %200 : vector<8x32xf32>
    %202 = vector.extract_strided_slice %194 {offsets = [0, 96], sizes = [8, 32], strides = [1, 1]} : vector<8x128xf32> to vector<8x32xf32>
    %203 = math.tanh %201 : vector<8x32xf32>
    %204 = arith.mulf %202, %203 : vector<8x32xf32>
    %205 = vector.extract_strided_slice %183 {offsets = [0, 1, 0], sizes = [8, 1, 128], strides = [1, 1, 1]} : vector<8x2x128xf32> to vector<8x1x128xf32>
    %206 = vector.shape_cast %205 : vector<8x1x128xf32> to vector<8x128xf32>
    %cst_48 = arith.constant dense<0.000000e+00> : vector<8x128xf32>
    %207 = tpu.matmul %204, %4, %cst_48 {dimension_numbers = #tpu.dot_dimension_numbers<[1], [0], [0], [1], [0, 0, 1, 1], [], []>} : vector<8x32xf32>, vector<32x128xf32>, vector<8x128xf32> -> vector<8x128xf32>
    %208 = arith.addf %206, %207 : vector<8x128xf32>
    %209 = arith.negf %208 : vector<8x128xf32>
    %210 = math.exp %209 : vector<8x128xf32>
    %cst_49 = arith.constant 1.000000e+00 : f32
    %211 = vector.broadcast %cst_49 : f32 to vector<8x128xf32>
    %212 = arith.addf %211, %210 : vector<8x128xf32>
    %213 = arith.divf %211, %212 : vector<8x128xf32>
    %214 = math.tanh %208 : vector<8x128xf32>
    %215 = vector.extract_strided_slice %213 {offsets = [0, 32], sizes = [8, 32], strides = [1, 1]} : vector<8x128xf32> to vector<8x32xf32>
    %216 = arith.mulf %215, %201 : vector<8x32xf32>
    %217 = vector.extract_strided_slice %213 {offsets = [0, 0], sizes = [8, 32], strides = [1, 1]} : vector<8x128xf32> to vector<8x32xf32>
    %218 = vector.extract_strided_slice %214 {offsets = [0, 64], sizes = [8, 32], strides = [1, 1]} : vector<8x128xf32> to vector<8x32xf32>
    %219 = arith.mulf %217, %218 : vector<8x32xf32>
    %220 = arith.addf %216, %219 : vector<8x32xf32>
    %221 = vector.extract_strided_slice %213 {offsets = [0, 96], sizes = [8, 32], strides = [1, 1]} : vector<8x128xf32> to vector<8x32xf32>
    %222 = math.tanh %220 : vector<8x32xf32>
    %223 = arith.mulf %221, %222 : vector<8x32xf32>
    %224 = vector.shape_cast %204 : vector<8x32xf32> to vector<1x8x32xf32>
    %225 = vector.shape_cast %223 : vector<8x32xf32> to vector<1x8x32xf32>
    %226 = tpu.concatenate %224, %225 in 0 : vector<1x8x32xf32>, vector<1x8x32xf32> -> vector<2x8x32xf32>
    %227 = vector.shape_cast %226 : vector<2x8x32xf32> to vector<16x32xf32>
    %cst_50 = arith.constant dense<0.000000e+00> : vector<16x32xf32>
    %228 = tpu.matmul %227, %5, %cst_50 {dimension_numbers = #tpu.dot_dimension_numbers<[1], [0], [0], [1], [0, 0, 1, 1], [], []>} : vector<16x32xf32>, vector<32x32xf32>, vector<16x32xf32> -> vector<16x32xf32>
    %229 = vector.shape_cast %228 : vector<16x32xf32> to vector<2x8x32xf32>
    %230 = vector.shape_cast %229 : vector<2x8x32xf32> to vector<16x32xf32>
    %cst_51 = arith.constant dense<0.000000e+00> : vector<16x128xf32>
    %231 = tpu.matmul %230, %6, %cst_51 {dimension_numbers = #tpu.dot_dimension_numbers<[1], [0], [0], [1], [0, 0, 1, 1], [], []>} : vector<16x32xf32>, vector<32x128xf32>, vector<16x128xf32> -> vector<16x128xf32>
    %232 = vector.shape_cast %231 : vector<16x128xf32> to vector<2x8x128xf32>
    %cst_52 = arith.constant 0.000000e+00 : f32
    %233 = vector.broadcast %cst_52 : f32 to vector<8x32xf32>
    %cst_53 = arith.constant 0.000000e+00 : f32
    %234 = vector.broadcast %cst_53 : f32 to vector<8x32xf32>
    %235 = vector.extract_strided_slice %232 {offsets = [0, 0, 0], sizes = [1, 8, 128], strides = [1, 1, 1]} : vector<2x8x128xf32> to vector<1x8x128xf32>
    %236 = vector.shape_cast %235 : vector<1x8x128xf32> to vector<8x128xf32>
    %cst_54 = arith.constant dense<0.000000e+00> : vector<8x128xf32>
    %237 = tpu.matmul %233, %7, %cst_54 {dimension_numbers = #tpu.dot_dimension_numbers<[1], [0], [0], [1], [0, 0, 1, 1], [], []>} : vector<8x32xf32>, vector<32x128xf32>, vector<8x128xf32> -> vector<8x128xf32>
    %238 = arith.addf %236, %237 : vector<8x128xf32>
    %239 = arith.negf %238 : vector<8x128xf32>
    %240 = math.exp %239 : vector<8x128xf32>
    %cst_55 = arith.constant 1.000000e+00 : f32
    %241 = vector.broadcast %cst_55 : f32 to vector<8x128xf32>
    %242 = arith.addf %241, %240 : vector<8x128xf32>
    %243 = arith.divf %241, %242 : vector<8x128xf32>
    %244 = math.tanh %238 : vector<8x128xf32>
    %245 = vector.extract_strided_slice %243 {offsets = [0, 32], sizes = [8, 32], strides = [1, 1]} : vector<8x128xf32> to vector<8x32xf32>
    %246 = arith.mulf %245, %234 : vector<8x32xf32>
    %247 = vector.extract_strided_slice %243 {offsets = [0, 0], sizes = [8, 32], strides = [1, 1]} : vector<8x128xf32> to vector<8x32xf32>
    %248 = vector.extract_strided_slice %244 {offsets = [0, 64], sizes = [8, 32], strides = [1, 1]} : vector<8x128xf32> to vector<8x32xf32>
    %249 = arith.mulf %247, %248 : vector<8x32xf32>
    %250 = arith.addf %246, %249 : vector<8x32xf32>
    %251 = vector.extract_strided_slice %243 {offsets = [0, 96], sizes = [8, 32], strides = [1, 1]} : vector<8x128xf32> to vector<8x32xf32>
    %252 = math.tanh %250 : vector<8x32xf32>
    %253 = arith.mulf %251, %252 : vector<8x32xf32>
    %254 = vector.extract_strided_slice %232 {offsets = [1, 0, 0], sizes = [1, 8, 128], strides = [1, 1, 1]} : vector<2x8x128xf32> to vector<1x8x128xf32>
    %255 = vector.shape_cast %254 : vector<1x8x128xf32> to vector<8x128xf32>
    %cst_56 = arith.constant dense<0.000000e+00> : vector<8x128xf32>
    %256 = tpu.matmul %253, %7, %cst_56 {dimension_numbers = #tpu.dot_dimension_numbers<[1], [0], [0], [1], [0, 0, 1, 1], [], []>} : vector<8x32xf32>, vector<32x128xf32>, vector<8x128xf32> -> vector<8x128xf32>
    %257 = arith.addf %255, %256 : vector<8x128xf32>
    %258 = arith.negf %257 : vector<8x128xf32>
    %259 = math.exp %258 : vector<8x128xf32>
    %cst_57 = arith.constant 1.000000e+00 : f32
    %260 = vector.broadcast %cst_57 : f32 to vector<8x128xf32>
    %261 = arith.addf %260, %259 : vector<8x128xf32>
    %262 = arith.divf %260, %261 : vector<8x128xf32>
    %263 = math.tanh %257 : vector<8x128xf32>
    %264 = vector.extract_strided_slice %262 {offsets = [0, 32], sizes = [8, 32], strides = [1, 1]} : vector<8x128xf32> to vector<8x32xf32>
    %265 = arith.mulf %264, %250 : vector<8x32xf32>
    %266 = vector.extract_strided_slice %262 {offsets = [0, 0], sizes = [8, 32], strides = [1, 1]} : vector<8x128xf32> to vector<8x32xf32>
    %267 = vector.extract_strided_slice %263 {offsets = [0, 64], sizes = [8, 32], strides = [1, 1]} : vector<8x128xf32> to vector<8x32xf32>
    %268 = arith.mulf %266, %267 : vector<8x32xf32>
    %269 = arith.addf %265, %268 : vector<8x32xf32>
    %270 = vector.extract_strided_slice %262 {offsets = [0, 96], sizes = [8, 32], strides = [1, 1]} : vector<8x128xf32> to vector<8x32xf32>
    %271 = math.tanh %269 : vector<8x32xf32>
    %272 = arith.mulf %270, %271 : vector<8x32xf32>
    %273 = vector.shape_cast %253 : vector<8x32xf32> to vector<1x8x32xf32>
    %274 = vector.shape_cast %272 : vector<8x32xf32> to vector<1x8x32xf32>
    %275 = tpu.concatenate %273, %274 in 0 : vector<1x8x32xf32>, vector<1x8x32xf32> -> vector<2x8x32xf32>
    %276 = vector.shape_cast %275 : vector<2x8x32xf32> to vector<16x32xf32>
    %cst_58 = arith.constant dense<0.000000e+00> : vector<16x32xf32>
    %277 = tpu.matmul %276, %8, %cst_58 {dimension_numbers = #tpu.dot_dimension_numbers<[1], [0], [0], [1], [0, 0, 1, 1], [], []>} : vector<16x32xf32>, vector<32x32xf32>, vector<16x32xf32> -> vector<16x32xf32>
    %278 = vector.shape_cast %277 : vector<16x32xf32> to vector<2x8x32xf32>
    %279 = vector.shape_cast %278 : vector<2x8x32xf32> to vector<16x32xf32>
    %cst_59 = arith.constant dense<0.000000e+00> : vector<16x3xf32>
    %280 = tpu.matmul %279, %9, %cst_59 {dimension_numbers = #tpu.dot_dimension_numbers<[1], [0], [0], [1], [0, 0, 1, 1], [], []>} : vector<16x32xf32>, vector<32x3xf32>, vector<16x3xf32> -> vector<16x3xf32>
    %281 = vector.broadcast %10 : vector<1x3xf32> to vector<16x3xf32>
    %282 = arith.addf %280, %281 : vector<16x3xf32>
    %283 = vector.shape_cast %282 : vector<16x3xf32> to vector<2x8x3xf32>
    %c0_60 = arith.constant 0 : index
    %c0_61 = arith.constant 0 : index
    %c0_62 = arith.constant 0 : index
    %284 = vector.load %arg12[%c0_60, %c0_61, %c0_62] : memref<2x8x3xf32, #tpu.memory_space<vmem>>, vector<2x8x3xf32>
    tpu.vector_store %arg12[%c0_60, %c0_61, %c0_62], %283 {strides = array<i32>} : memref<2x8x3xf32, #tpu.memory_space<vmem>>, vector<2x8x3xf32>,
    return
  }
}

</mosaic_0001>

<llo_original>
// kernel: linear_combo_lstm_forward.1
$region0: #{linear_combo_lstm_forward.1}
  #allocation0 [shape = 'u32[]', space=smem, size = 0x4, offset = 0x4, fixed_abs, tag = 'smem constant byte address 0x4 - core index']
  #allocation1 [shape = 'u32[144,128]{1,0:T(1,128)}', space=vmem, size = 0x12000, scoped, tag = 'internal scratch']
  %s0 = inlined_call_operand.vmem [shape: f32[8,2,4], index: 0, kind: input, shape index: {}]
  %s1 = inlined_call_operand.hbm [shape: f32[4,128], index: 1, kind: input, shape index: {}]
  %s2 = inlined_call_operand.vmem [shape: f32[32,128], index: 2, kind: input, shape index: {}]
  %s3 = inlined_call_operand.vmem [shape: f32[32,32], index: 3, kind: input, shape index: {}]
  %s4 = inlined_call_operand.hbm [shape: f32[32,128], index: 4, kind: input, shape index: {}]
  %s5 = inlined_call_operand.hbm [shape: f32[32,128], index: 5, kind: input, shape index: {}]
  %s6 = inlined_call_operand.hbm [shape: f32[32,32], index: 6, kind: input, shape index: {}]
  %s7 = inlined_call_operand.hbm [shape: f32[32,128], index: 7, kind: input, shape index: {}]
  %s8 = inlined_call_operand.hbm [shape: f32[32,128], index: 8, kind: input, shape index: {}]
  %s9 = inlined_call_operand.hbm [shape: f32[32,32], index: 9, kind: input, shape index: {}]
  %s10 = inlined_call_operand.vmem [shape: f32[32,3], index: 10, kind: input, shape index: {}]
  %s11 = inlined_call_operand.vmem [shape: f32[1,3], index: 11, kind: input, shape index: {}]
  %s12 = inlined_call_operand.vmem [shape: f32[2,8,3], index: 12, kind: output, shape index: {}]
  %s13 = sld [smem:[#allocation0]]
  $region86: #{linear_combo_lstm_forward.1} parent=0
    _
  %s15 = ssub.s32 1, %s13
  %s16 = scalar_select 0, %s15, %s13
  $region1: #{linear_combo_lstm_forward.1} parent=0
    #allocation2 [shape = 'u8[2048]{0}', space=vmem, size = 0x800, scoped, tag = 'input window, operand 1, single buffered']
    #allocation3 [shape = 's32[1]{0}', space=sflag, size = 0x4, scoped, tag = 'scoped memory for linear_combo_lstm_forward.1']
    #allocation4 [shape = 'u8[16384]{0}', space=vmem, size = 0x4000, scoped, tag = 'input window, operand 4, single buffered']
    #allocation5 [shape = 's32[1]{0}', space=sflag, size = 0x4, scoped, tag = 'scoped memory for linear_combo_lstm_forward.1']
    #allocation6 [shape = 'u8[16384]{0}', space=vmem, size = 0x4000, scoped, tag = 'input window, operand 5, single buffered']
    #allocation7 [shape = 'u8[16384]{0}', space=vmem, size = 0x4000, scoped, tag = 'input window, operand 6, single buffered']
    #allocation8 [shape = 's32[1]{0}', space=sflag, size = 0x4, scoped, tag = 'scoped memory for linear_combo_lstm_forward.1']
    #allocation9 [shape = 'u8[16384]{0}', space=vmem, size = 0x4000, scoped, tag = 'input window, operand 7, single buffered']
    #allocation10 [shape = 'u8[16384]{0}', space=vmem, size = 0x4000, scoped, tag = 'input window, operand 8, single buffered']
    #allocation11 [shape = 's32[1]{0}', space=sflag, size = 0x4, scoped, tag = 'scoped memory for linear_combo_lstm_forward.1']
    #allocation12 [shape = 'u8[16384]{0}', space=vmem, size = 0x4000, scoped, tag = 'input window, operand 9, single buffered']
    %17 = vsyncpa [#allocation3], 0
    %18 = vsyncpa [#allocation5], 0
    %19 = vsyncpa [#allocation8], 0
    %20 = vsyncpa [#allocation11], 0
    // Predicated region
    $region2: #{linear_combo_lstm_forward.1} parent=1 // pred_check
      _
    $region3: #{linear_combo_lstm_forward.1} parent=1 // pred_check_branch
      %22 = sbr.rel (0) target = $region5
    $region4: #{linear_combo_lstm_forward.1} parent=1 // pred_region
      _
    $region5: #{linear_combo_lstm_forward.1} parent=1 // pred_fallthru
      _
    // Predicated region
    $region6: #{linear_combo_lstm_forward.1} parent=1 // pred_check
      _
    $region7: #{linear_combo_lstm_forward.1} parent=1 // pred_check_branch
      %24 = sbr.rel (0) target = $region9
    $region8: #{linear_combo_lstm_forward.1} parent=1 // pred_region
      %s26 = ssub.s32 64, 64
      %27 = vsyncadd [#allocation3], %s26
      %s29 = sshll.u32 [#allocation2], 4
      %s30 = int_to_ptr.vmem [resolvable:$true] %s29
      %32 = dma.hbm_to_vmem [thread:$0]  %s1, 64, %s30, [#allocation3]
    $region9: #{linear_combo_lstm_forward.1} parent=1 // pred_fallthru
      _
    // Predicated region
    $region10: #{linear_combo_lstm_forward.1} parent=1 // pred_check
      _
    $region11: #{linear_combo_lstm_forward.1} parent=1 // pred_check_branch
      %34 = sbr.rel (0) target = $region13
    $region12: #{linear_combo_lstm_forward.1} parent=1 // pred_region
      _
    $region13: #{linear_combo_lstm_forward.1} parent=1 // pred_fallthru
      _
    // Predicated region
    $region14: #{linear_combo_lstm_forward.1} parent=1 // pred_check
      _
    $region15: #{linear_combo_lstm_forward.1} parent=1 // pred_check_branch
      %36 = sbr.rel (0) target = $region17
    $region16: #{linear_combo_lstm_forward.1} parent=1 // pred_region
      _
    $region17: #{linear_combo_lstm_forward.1} parent=1 // pred_fallthru
      _
    // Predicated region
    $region18: #{linear_combo_lstm_forward.1} parent=1 // pred_check
      _
    $region19: #{linear_combo_lstm_forward.1} parent=1 // pred_check_branch
      %38 = sbr.rel (0) target = $region21
    $region20: #{linear_combo_lstm_forward.1} parent=1 // pred_region
      %s40 = ssub.s32 512, 512
      %41 = vsyncadd [#allocation5], %s40
      %s42 = sshll.u32 [#allocation4], 4
      %s43 = int_to_ptr.vmem [resolvable:$true] %s42
      %48 = dma.hbm_to_vmem [thread:$0]  %s4, 512, %s43, [#allocation5], 128, 128, 8
    $region21: #{linear_combo_lstm_forward.1} parent=1 // pred_fallthru
      _
    // Predicated region
    $region22: #{linear_combo_lstm_forward.1} parent=1 // pred_check
      _
    $region23: #{linear_combo_lstm_forward.1} parent=1 // pred_check_branch
      %50 = sbr.rel (0) target = $region25
    $region24: #{linear_combo_lstm_forward.1} parent=1 // pred_region
      %s52 = ssub.s32 512, 512
      %53 = vsyncadd [#allocation5], %s52
      %s54 = sshll.u32 [#allocation6], 4
      %s55 = int_to_ptr.vmem [resolvable:$true] %s54
      %60 = dma.hbm_to_vmem [thread:$0]  %s5, 512, %s55, [#allocation5], 128, 128, 8
    $region25: #{linear_combo_lstm_forward.1} parent=1 // pred_fallthru
      _
    // Predicated region
    $region26: #{linear_combo_lstm_forward.1} parent=1 // pred_check
      _
    $region27: #{linear_combo_lstm_forward.1} parent=1 // pred_check_branch
      %62 = sbr.rel (0) target = $region29
    $region28: #{linear_combo_lstm_forward.1} parent=1 // pred_region
      %s64 = ssub.s32 512, 512
      %65 = vsyncadd [#allocation8], %s64
      %s66 = sshll.u32 [#allocation7], 4
      %s67 = int_to_ptr.vmem [resolvable:$true] %s66
      %72 = dma.hbm_to_vmem [thread:$0]  %s6, 512, %s67, [#allocation8], 128, 128, 8
    $region29: #{linear_combo_lstm_forward.1} parent=1 // pred_fallthru
      _
    // Predicated region
    $region30: #{linear_combo_lstm_forward.1} parent=1 // pred_check
      _
    $region31: #{linear_combo_lstm_forward.1} parent=1 // pred_check_branch
      %74 = sbr.rel (0) target = $region33
    $region32: #{linear_combo_lstm_forward.1} parent=1 // pred_region
      %s76 = ssub.s32 512, 512
      %77 = vsyncadd [#allocation8], %s76
      %s78 = sshll.u32 [#allocation9], 4
      %s79 = int_to_ptr.vmem [resolvable:$true] %s78
      %84 = dma.hbm_to_vmem [thread:$0]  %s7, 512, %s79, [#allocation8], 128, 128, 8
    $region33: #{linear_combo_lstm_forward.1} parent=1 // pred_fallthru
      _
    // Predicated region
    $region34: #{linear_combo_lstm_forward.1} parent=1 // pred_check
      _
    $region35: #{linear_combo_lstm_forward.1} parent=1 // pred_check_branch
      %86 = sbr.rel (0) target = $region37
    $region36: #{linear_combo_lstm_forward.1} parent=1 // pred_region
      %s88 = ssub.s32 512, 512
      %89 = vsyncadd [#allocation11], %s88
      %s90 = sshll.u32 [#allocation10], 4
      %s91 = int_to_ptr.vmem [resolvable:$true] %s90
      %96 = dma.hbm_to_vmem [thread:$0]  %s8, 512, %s91, [#allocation11], 128, 128, 8
    $region37: #{linear_combo_lstm_forward.1} parent=1 // pred_fallthru
      _
    // Predicated region
    $region38: #{linear_combo_lstm_forward.1} parent=1 // pred_check
      _
    $region39: #{linear_combo_lstm_forward.1} parent=1 // pred_check_branch
      %98 = sbr.rel (0) target = $region41
    $region40: #{linear_combo_lstm_forward.1} parent=1 // pred_region
      %s100 = ssub.s32 512, 512
      %101 = vsyncadd [#allocation11], %s100
      %s102 = sshll.u32 [#allocation12], 4
      %s103 = int_to_ptr.vmem [resolvable:$true] %s102
      %108 = dma.hbm_to_vmem [thread:$0]  %s9, 512, %s103, [#allocation11], 128, 128, 8
    $region41: #{linear_combo_lstm_forward.1} parent=1 // pred_fallthru
      _
    // Predicated region
    $region42: #{linear_combo_lstm_forward.1} parent=1 // pred_check
      _
    $region43: #{linear_combo_lstm_forward.1} parent=1 // pred_check_branch
      %110 = sbr.rel (0) target = $region45
    $region44: #{linear_combo_lstm_forward.1} parent=1 // pred_region
      _
    $region45: #{linear_combo_lstm_forward.1} parent=1 // pred_fallthru
      _
    // Predicated region
    $region46: #{linear_combo_lstm_forward.1} parent=1 // pred_check
      _
    $region47: #{linear_combo_lstm_forward.1} parent=1 // pred_check_branch
      %112 = sbr.rel (0) target = $region49
    $region48: #{linear_combo_lstm_forward.1} parent=1 // pred_region
      _
    $region49: #{linear_combo_lstm_forward.1} parent=1 // pred_fallthru
      _
    // Predicated region
    $region50: #{linear_combo_lstm_forward.1} parent=1 // pred_check
      _
    $region51: #{linear_combo_lstm_forward.1} parent=1 // pred_check_branch
      %114 = sbr.rel (0) target = $region53
    $region52: #{linear_combo_lstm_forward.1} parent=1 // pred_region
      %115 = dma.done [#allocation3], 64
    $region53: #{linear_combo_lstm_forward.1} parent=1 // pred_fallthru
      _
    // Predicated region
    $region54: #{linear_combo_lstm_forward.1} parent=1 // pred_check
      _
    $region55: #{linear_combo_lstm_forward.1} parent=1 // pred_check_branch
      %117 = sbr.rel (0) target = $region57
    $region56: #{linear_combo_lstm_forward.1} parent=1 // pred_region
      %118 = dma.done [#allocation5], 512
    $region57: #{linear_combo_lstm_forward.1} parent=1 // pred_fallthru
      _
    // Predicated region
    $region58: #{linear_combo_lstm_forward.1} parent=1 // pred_check
      _
    $region59: #{linear_combo_lstm_forward.1} parent=1 // pred_check_branch
      %120 = sbr.rel (0) target = $region61
    $region60: #{linear_combo_lstm_forward.1} parent=1 // pred_region
      %121 = dma.done [#allocation5], 512
    $region61: #{linear_combo_lstm_forward.1} parent=1 // pred_fallthru
      _
    // Predicated region
    $region62: #{linear_combo_lstm_forward.1} parent=1 // pred_check
      _
    $region63: #{linear_combo_lstm_forward.1} parent=1 // pred_check_branch
      %123 = sbr.rel (0) target = $region65
    $region64: #{linear_combo_lstm_forward.1} parent=1 // pred_region
      %124 = dma.done [#allocation8], 512
    $region65: #{linear_combo_lstm_forward.1} parent=1 // pred_fallthru
      _
    // Predicated region
    $region66: #{linear_combo_lstm_forward.1} parent=1 // pred_check
      _
    $region67: #{linear_combo_lstm_forward.1} parent=1 // pred_check_branch
      %126 = sbr.rel (0) target = $region69
    $region68: #{linear_combo_lstm_forward.1} parent=1 // pred_region
      %127 = dma.done [#allocation8], 512
    $region69: #{linear_combo_lstm_forward.1} parent=1 // pred_fallthru
      _
    // Predicated region
    $region70: #{linear_combo_lstm_forward.1} parent=1 // pred_check
      _
    $region71: #{linear_combo_lstm_forward.1} parent=1 // pred_check_branch
      %129 = sbr.rel (0) target = $region73
    $region72: #{linear_combo_lstm_forward.1} parent=1 // pred_region
      %130 = dma.done [#allocation11], 512
    $region73: #{linear_combo_lstm_forward.1} parent=1 // pred_fallthru
      _
    // Predicated region
    $region74: #{linear_combo_lstm_forward.1} parent=1 // pred_check
      _
    $region75: #{linear_combo_lstm_forward.1} parent=1 // pred_check_branch
      %132 = sbr.rel (0) target = $region77
    $region76: #{linear_combo_lstm_forward.1} parent=1 // pred_region
      %133 = dma.done [#allocation11], 512
    $region77: #{linear_combo_lstm_forward.1} parent=1 // pred_fallthru
      _
    %v134 = vld [vmem:[#allocation2] sm:$0xf]
    %v135 = vld [vmem:[%s2] sm:$0xff]
    %v136 = vld [vmem:[%s2 + $0x8] sm:$0xff]
    %v137 = vld [vmem:[%s2 + $0x10] sm:$0xff]
    %v138 = vld [vmem:[%s2 + $0x18] sm:$0xff]
    %v139 = vld [vmem:[%s3] sm:$0xff]
    %v140 = vld [vmem:[%s3 + $0x8] sm:$0xff]
    %v141 = vld [vmem:[%s3 + $0x10] sm:$0xff]
    %v142 = vld [vmem:[%s3 + $0x18] sm:$0xff]
    %v143 = vld [vmem:[#allocation4] sm:$0xff]
    %v144 = vld [vmem:[#allocation4 + $0x8] sm:$0xff]
    %v145 = vld [vmem:[#allocation4 + $0x10] sm:$0xff]
    %v146 = vld [vmem:[#allocation4 + $0x18] sm:$0xff]
    %v147 = vld [vmem:[#allocation6] sm:$0xff]
    %v148 = vld [vmem:[#allocation6 + $0x8] sm:$0xff]
    %v149 = vld [vmem:[#allocation6 + $0x10] sm:$0xff]
    %v150 = vld [vmem:[#allocation6 + $0x18] sm:$0xff]
    %v151 = vld [vmem:[#allocation7] sm:$0xff]
    %v152 = vld [vmem:[#allocation7 + $0x8] sm:$0xff]
    %v153 = vld [vmem:[#allocation7 + $0x10] sm:$0xff]
    %v154 = vld [vmem:[#allocation7 + $0x18] sm:$0xff]
    %v155 = vld [vmem:[#allocation9] sm:$0xff]
    %v156 = vld [vmem:[#allocation9 + $0x8] sm:$0xff]
    %v157 = vld [vmem:[#allocation9 + $0x10] sm:$0xff]
    %v158 = vld [vmem:[#allocation9 + $0x18] sm:$0xff]
    %v159 = vld [vmem:[#allocation10] sm:$0xff]
    %v160 = vld [vmem:[#allocation10 + $0x8] sm:$0xff]
    %v161 = vld [vmem:[#allocation10 + $0x10] sm:$0xff]
    %v162 = vld [vmem:[#allocation10 + $0x18] sm:$0xff]
    %v163 = vld [vmem:[#allocation12] sm:$0xff]
    %v164 = vld [vmem:[#allocation12 + $0x8] sm:$0xff]
    %v165 = vld [vmem:[#allocation12 + $0x10] sm:$0xff]
    %v166 = vld [vmem:[#allocation12 + $0x18] sm:$0xff]
    %v167 = vld [vmem:[%s10] sm:$0xff]
    %v168 = vld [vmem:[%s10 + $0x8] sm:$0xff]
    %v169 = vld [vmem:[%s10 + $0x10] sm:$0xff]
    %v170 = vld [vmem:[%s10 + $0x18] sm:$0xff]
    %v171 = vld [vmem:[%s11] sm:$0x1]
    %v172 = vld [vmem:[%s0] sm:$0x3]
    %v173 = vld [vmem:[%s0 + $0x2] sm:$0x3]
    %v174 = vld [vmem:[%s0 + $0x4] sm:$0x3]
    %v175 = vld [vmem:[%s0 + $0x6] sm:$0x3]
    %v176 = vld [vmem:[%s0 + $0x8] sm:$0x3]
    %v177 = vld [vmem:[%s0 + $0xa] sm:$0x3]
    %v178 = vld [vmem:[%s0 + $0xc] sm:$0x3]
    %v179 = vld [vmem:[%s0 + $0xe] sm:$0x3]
    %v188 = vcombine.low %v172, %v173
    %v189 = vcombine.low %v174, %v175
    %v191 = vunpack.c.l.s4 1983009808
    %v192 = vunpack.c.0.s8 %v191
    %v193 = vlaneseq
    %v194 = vshrl.u32 %v193, 7
    %v195 = vsub.s32 %v192, %v194
    %v196 = vrot.slane %v188, %v195
    %v198 = vunpack.c.l.s4 1983009808
    %v199 = vunpack.c.0.s8 %v198
    %v200 = vlaneseq
    %v201 = vshrl.u32 %v200, 7
    %v202 = vsub.s32 %v199, %v201
    %v203 = vrot.slane %v189, %v202
    %v204 = vcombine.low %v196, %v203
    %v205 = vcombine.low %v176, %v177
    %v206 = vcombine.low %v178, %v179
    %v208 = vunpack.c.l.s4 1983009808
    %v209 = vunpack.c.0.s8 %v208
    %v210 = vlaneseq
    %v211 = vshrl.u32 %v210, 7
    %v212 = vsub.s32 %v209, %v211
    %v213 = vrot.slane %v205, %v212
    %v215 = vunpack.c.l.s4 1983009808
    %v216 = vunpack.c.0.s8 %v215
    %v217 = vlaneseq
    %v218 = vshrl.u32 %v217, 7
    %v219 = vsub.s32 %v216, %v218
    %v220 = vrot.slane %v206, %v219
    %v221 = vcombine.low %v213, %v220
    %vm222 = vcmask 31744
    %v223 = vsel %vm222, %v204, 0
    %v225 = vsel %vm222, %v221, 0
    %vm227 = vcmask 1043456
    %v229 = vsel %vm227, %v134, 0
    %231 = vmatprep.subr.mxu0 0.0
    %232 = vmatpush1.msra.mxu0 0.0
    %233 = vmatprep.subr.mxu0 0.0
    %234 = vmatpush1.msra.mxu0 0.0
    %235 = vmatprep.subr.mxu0 0.0
    %236 = vmatpush1.msra.mxu0 0.0
    %237 = vmatprep.subr.mxu0 0.0
    %238 = vmatpush1.msra.mxu0 0.0
    %239 = vmatprep.subr.mxu0 0.0
    %240 = vmatpush1.msra.mxu0 0.0
    %241 = vmatprep.subr.mxu0 0.0
    %242 = vmatpush1.msra.mxu0 0.0
    %243 = vmatprep.subr.mxu0 0.0
    %244 = vmatpush1.msra.mxu0 0.0
    %245 = vmatprep.subr.mxu0 0.0
    %246 = vmatpush1.msra.mxu0 0.0
    %247 = vmatprep.subr.mxu0 0.0
    %248 = vmatpush1.msra.mxu0 0.0
    %249 = vmatprep.subr.mxu0 0.0
    %250 = vmatpush1.msra.mxu0 0.0
    %251 = vmatprep.subr.mxu0 0.0
    %252 = vmatpush1.msra.mxu0 0.0
    %253 = vmatprep.subr.mxu0 0.0
    %254 = vmatpush1.msra.mxu0 0.0
    %255 = vmatprep.subr.mxu0 0.0
    %256 = vmatpush1.msra.mxu0 0.0
    %257 = vmatprep.subr.mxu0 0.0
    %258 = vmatpush1.msra.mxu0 0.0
    %259 = vmatprep.subr.mxu0 0.0
    %260 = vmatpush1.msra.mxu0 0.0
    %261 = vmatprep.subr.mxu0 0.0
    %262 = vmatpush1.msra.mxu0 %v229
    %263 = vmatprep.subr.mxu0 0.0
    %264 = vmatpush2.msra.mxu0 0.0
    %265 = vmatprep.subr.mxu0 0.0
    %266 = vmatpush2.msra.mxu0 0.0
    %267 = vmatprep.subr.mxu0 0.0
    %268 = vmatpush2.msra.mxu0 0.0
    %269 = vmatprep.subr.mxu0 0.0
    %270 = vmatpush2.msra.mxu0 0.0
    %271 = vmatprep.subr.mxu0 0.0
    %272 = vmatpush2.msra.mxu0 0.0
    %273 = vmatprep.subr.mxu0 0.0
    %274 = vmatpush2.msra.mxu0 0.0
    %275 = vmatprep.subr.mxu0 0.0
    %276 = vmatpush2.msra.mxu0 0.0
    %277 = vmatprep.subr.mxu0 0.0
    %278 = vmatpush2.msra.mxu0 0.0
    %279 = vmatprep.subr.mxu0 0.0
    %280 = vmatpush2.msra.mxu0 0.0
    %281 = vmatprep.subr.mxu0 0.0
    %282 = vmatpush2.msra.mxu0 0.0
    %283 = vmatprep.subr.mxu0 0.0
    %284 = vmatpush2.msra.mxu0 0.0
    %285 = vmatprep.subr.mxu0 0.0
    %286 = vmatpush2.msra.mxu0 0.0
    %287 = vmatprep.subr.mxu0 0.0
    %288 = vmatpush2.msra.mxu0 0.0
    %289 = vmatprep.subr.mxu0 0.0
    %290 = vmatpush2.msra.mxu0 0.0
    %291 = vmatprep.subr.mxu0 0.0
    %292 = vmatpush2.msra.mxu0 0.0
    %293 = vmatprep.subr.mxu0 0.0
    %294 = vmatpush2.msra.mxu0 0.0
    %295 = vmatprep.mubr.f32.mxu0 0.0
    %296 = vmatmul.mubr.f32.gmra.mxu0 %v223
    %v297 = vpop.f32.mrf.mxu0
    %v298 = vadd.f32 0.0, %v297
    %v299 = vpop.f32.mrf.mxu0
    %300 = vmatprep.mubr.f32.mxu0 0.0
    %301 = vmatmul.mubr.f32.gmra.mxu0 %v225
    %v302 = vpop.f32.mrf.mxu0
    %v303 = vadd.f32 0.0, %v302
    %v304 = vpop.f32.mrf.mxu0
    %305 = vdwg.mxu0
    %v308 = vcombine.high %v298, %v298
    %v310 = vunpack.c.l.s4 1983009808
    %v311 = vunpack.c.0.s8 %v310
    %v312 = vlaneseq
    %v313 = vshrl.u32 %v312, 7
    %v314 = vsub.s32 %v311, %v313
    %v315 = vrot.slane %v298, %v314
    %v317 = vunpack.c.l.s4 1983009808
    %v318 = vunpack.c.0.s8 %v317
    %v319 = vlaneseq
    %v320 = vshrl.u32 %v319, 7
    %v321 = vsub.s32 %v318, %v320
    %v322 = vrot.slane %v308, %v321
    %v323 = vcombine.high %v315, %v315
    %v324 = vcombine.high %v322, %v322
    %v325 = vcombine.high %v303, %v303
    %v327 = vunpack.c.l.s4 1983009808
    %v328 = vunpack.c.0.s8 %v327
    %v329 = vlaneseq
    %v330 = vshrl.u32 %v329, 7
    %v331 = vsub.s32 %v328, %v330
    %v332 = vrot.slane %v303, %v331
    %v334 = vunpack.c.l.s4 1983009808
    %v335 = vunpack.c.0.s8 %v334
    %v336 = vlaneseq
    %v337 = vshrl.u32 %v336, 7
    %v338 = vsub.s32 %v335, %v337
    %v339 = vrot.slane %v325, %v338
    %v340 = vcombine.high %v332, %v332
    %v341 = vcombine.high %v339, %v339
    %vm350 = vcmask 261120
    %v352 = vsel %vm350, 0.0, 0
    %354 = vmatprep.subr.mxu0 0.0
    %355 = vmatpush1.msra.mxu0 0.0
    %356 = vmatprep.subr.mxu0 0.0
    %357 = vmatpush1.msra.mxu0 0.0
    %358 = vmatprep.subr.mxu0 0.0
    %359 = vmatpush1.msra.mxu0 0.0
    %360 = vmatprep.subr.mxu0 0.0
    %361 = vmatpush1.msra.mxu0 0.0
    %362 = vmatprep.subr.mxu0 0.0
    %363 = vmatpush1.msra.mxu0 0.0
    %364 = vmatprep.subr.mxu0 0.0
    %365 = vmatpush1.msra.mxu0 0.0
    %366 = vmatprep.subr.mxu0 0.0
    %367 = vmatpush1.msra.mxu0 0.0
    %368 = vmatprep.subr.mxu0 0.0
    %369 = vmatpush1.msra.mxu0 0.0
    %370 = vmatprep.subr.mxu0 0.0
    %371 = vmatpush1.msra.mxu0 0.0
    %372 = vmatprep.subr.mxu0 0.0
    %373 = vmatpush1.msra.mxu0 0.0
    %374 = vmatprep.subr.mxu0 0.0
    %375 = vmatpush1.msra.mxu0 0.0
    %376 = vmatprep.subr.mxu0 0.0
    %377 = vmatpush1.msra.mxu0 0.0
    %378 = vmatprep.subr.mxu0 0.0
    %379 = vmatpush1.msra.mxu0 %v138
    %380 = vmatprep.subr.mxu0 0.0
    %381 = vmatpush1.msra.mxu0 %v137
    %382 = vmatprep.subr.mxu0 0.0
    %383 = vmatpush1.msra.mxu0 %v136
    %384 = vmatprep.subr.mxu0 0.0
    %385 = vmatpush1.msra.mxu0 %v135
    %386 = vmatprep.subr.mxu0 0.0
    %387 = vmatpush2.msra.mxu0 0.0
    %388 = vmatprep.subr.mxu0 0.0
    %389 = vmatpush2.msra.mxu0 0.0
    %390 = vmatprep.subr.mxu0 0.0
    %391 = vmatpush2.msra.mxu0 0.0
    %392 = vmatprep.subr.mxu0 0.0
    %393 = vmatpush2.msra.mxu0 0.0
    %394 = vmatprep.subr.mxu0 0.0
    %395 = vmatpush2.msra.mxu0 0.0
    %396 = vmatprep.subr.mxu0 0.0
    %397 = vmatpush2.msra.mxu0 0.0
    %398 = vmatprep.subr.mxu0 0.0
    %399 = vmatpush2.msra.mxu0 0.0
    %400 = vmatprep.subr.mxu0 0.0
    %401 = vmatpush2.msra.mxu0 0.0
    %402 = vmatprep.subr.mxu0 0.0
    %403 = vmatpush2.msra.mxu0 0.0
    %404 = vmatprep.subr.mxu0 0.0
    %405 = vmatpush2.msra.mxu0 0.0
    %406 = vmatprep.subr.mxu0 0.0
    %407 = vmatpush2.msra.mxu0 0.0
    %408 = vmatprep.subr.mxu0 0.0
    %409 = vmatpush2.msra.mxu0 0.0
    %410 = vmatprep.subr.mxu0 0.0
    %411 = vmatpush2.msra.mxu0 0.0
    %412 = vmatprep.subr.mxu0 0.0
    %413 = vmatpush2.msra.mxu0 0.0
    %414 = vmatprep.subr.mxu0 0.0
    %415 = vmatpush2.msra.mxu0 0.0
    %416 = vmatprep.subr.mxu0 0.0
    %417 = vmatpush2.msra.mxu0 0.0
    %418 = vmatprep.mubr.f32.mxu0 0.0
    %419 = vmatmul.mubr.f32.gmra.mxu0 %v352
    %v420 = vpop.f32.mrf.mxu0
    %v421 = vadd.f32 0.0, %v420
    %v422 = vpop.f32.mrf.mxu0
    %423 = vdwg.mxu0
    %v424 = vadd.f32 %v315, %v421
    %v425 = vxor.u32 %v424, 2147483648
    %v426 = vmul.f32 %v425, 1.442695
    %v427 = vpow.pop %v426
    %v428 = vadd.f32 %v427, 1.0
    %v429 = vrcp.pop %v428
    %v430 = vmul.f32 1.0, %v429
    %v431 = vtanh.pop %v424
    %v432 = vmul.f32 %v430, 0.0
    %434 = vrot.lane.b32.xlu0 %v431, 64
    %v435 = vpop.permute.xlu0 %434
    %v437 = vmul.f32 %v430, %v435
    %439 = vrot.lane.b32.xlu0 %v437, 32
    %v440 = vpop.permute.xlu0 %439
    %v442 = vadd.f32 %v432, %v440
    %v443 = vtanh.pop %v442
    %445 = vrot.lane.b32.xlu0 %v443, 64
    %v446 = vpop.permute.xlu0 %445
    %v448 = vmul.f32 %v430, %v446
    %v451 = vunpack.c.l.s4 1983009808
    %v452 = vunpack.c.0.s8 %v451
    %v453 = vlaneseq
    %v454 = vshrl.u32 %v453, 7
    %v455 = vsub.s32 %v452, %v454
    %v456 = vrot.slane %v448, %v455
    %457 = vrot.lane.b32.xlu0 %v456, 32
    %v458 = vpop.permute.xlu0 %457
    %v459 = vsel %vm350, %v458, 0
    %461 = vmatprep.subr.mxu0 0.0
    %462 = vmatpush1.msra.mxu0 0.0
    %463 = vmatprep.subr.mxu0 0.0
    %464 = vmatpush1.msra.mxu0 0.0
    %465 = vmatprep.subr.mxu0 0.0
    %466 = vmatpush1.msra.mxu0 0.0
    %467 = vmatprep.subr.mxu0 0.0
    %468 = vmatpush1.msra.mxu0 0.0
    %469 = vmatprep.subr.mxu0 0.0
    %470 = vmatpush1.msra.mxu0 0.0
    %471 = vmatprep.subr.mxu0 0.0
    %472 = vmatpush1.msra.mxu0 0.0
    %473 = vmatprep.subr.mxu0 0.0
    %474 = vmatpush1.msra.mxu0 0.0
    %475 = vmatprep.subr.mxu0 0.0
    %476 = vmatpush1.msra.mxu0 0.0
    %477 = vmatprep.subr.mxu0 0.0
    %478 = vmatpush1.msra.mxu0 0.0
    %479 = vmatprep.subr.mxu0 0.0
    %480 = vmatpush1.msra.mxu0 0.0
    %481 = vmatprep.subr.mxu0 0.0
    %482 = vmatpush1.msra.mxu0 0.0
    %483 = vmatprep.subr.mxu0 0.0
    %484 = vmatpush1.msra.mxu0 0.0
    %485 = vmatprep.subr.mxu0 0.0
    %486 = vmatpush1.msra.mxu0 %v138
    %487 = vmatprep.subr.mxu0 0.0
    %488 = vmatpush1.msra.mxu0 %v137
    %489 = vmatprep.subr.mxu0 0.0
    %490 = vmatpush1.msra.mxu0 %v136
    %491 = vmatprep.subr.mxu0 0.0
    %492 = vmatpush1.msra.mxu0 %v135
    %493 = vmatprep.subr.mxu0 0.0
    %494 = vmatpush2.msra.mxu0 0.0
    %495 = vmatprep.subr.mxu0 0.0
    %496 = vmatpush2.msra.mxu0 0.0
    %497 = vmatprep.subr.mxu0 0.0
    %498 = vmatpush2.msra.mxu0 0.0
    %499 = vmatprep.subr.mxu0 0.0
    %500 = vmatpush2.msra.mxu0 0.0
    %501 = vmatprep.subr.mxu0 0.0
    %502 = vmatpush2.msra.mxu0 0.0
    %503 = vmatprep.subr.mxu0 0.0
    %504 = vmatpush2.msra.mxu0 0.0
    %505 = vmatprep.subr.mxu0 0.0
    %506 = vmatpush2.msra.mxu0 0.0
    %507 = vmatprep.subr.mxu0 0.0
    %508 = vmatpush2.msra.mxu0 0.0
    %509 = vmatprep.subr.mxu0 0.0
    %510 = vmatpush2.msra.mxu0 0.0
    %511 = vmatprep.subr.mxu0 0.0
    %512 = vmatpush2.msra.mxu0 0.0
    %513 = vmatprep.subr.mxu0 0.0
    %514 = vmatpush2.msra.mxu0 0.0
    %515 = vmatprep.subr.mxu0 0.0
    %516 = vmatpush2.msra.mxu0 0.0
    %517 = vmatprep.subr.mxu0 0.0
    %518 = vmatpush2.msra.mxu0 0.0
    %519 = vmatprep.subr.mxu0 0.0
    %520 = vmatpush2.msra.mxu0 0.0
    %521 = vmatprep.subr.mxu0 0.0
    %522 = vmatpush2.msra.mxu0 0.0
    %523 = vmatprep.subr.mxu0 0.0
    %524 = vmatpush2.msra.mxu0 0.0
    %525 = vmatprep.mubr.f32.mxu0 0.0
    %526 = vmatmul.mubr.f32.gmra.mxu0 %v459
    %v527 = vpop.f32.mrf.mxu0
    %v528 = vadd.f32 0.0, %v527
    %v529 = vpop.f32.mrf.mxu0
    %530 = vdwg.mxu0
    %v531 = vadd.f32 %v323, %v528
    %v532 = vxor.u32 %v531, 2147483648
    %v533 = vmul.f32 %v532, 1.442695
    %v534 = vpow.pop %v533
    %v535 = vadd.f32 %v534, 1.0
    %v536 = vrcp.pop %v535
    %v537 = vmul.f32 1.0, %v536
    %v538 = vtanh.pop %v531
    %v539 = vmul.f32 %v537, %v442
    %541 = vrot.lane.b32.xlu0 %v538, 64
    %v542 = vpop.permute.xlu0 %541
    %v544 = vmul.f32 %v537, %v542
    %546 = vrot.lane.b32.xlu0 %v544, 32
    %v547 = vpop.permute.xlu0 %546
    %v549 = vadd.f32 %v539, %v547
    %v550 = vtanh.pop %v549
    %552 = vrot.lane.b32.xlu0 %v550, 64
    %v553 = vpop.permute.xlu0 %552
    %v555 = vmul.f32 %v537, %v553
    %v558 = vunpack.c.l.s4 1983009808
    %v559 = vunpack.c.0.s8 %v558
    %v560 = vlaneseq
    %v561 = vshrl.u32 %v560, 7
    %v562 = vsub.s32 %v559, %v561
    %v563 = vrot.slane %v555, %v562
    %564 = vrot.lane.b32.xlu0 %v563, 32
    %v565 = vpop.permute.xlu0 %564
    %v566 = vsel %vm350, %v565, 0
    %568 = vmatprep.subr.mxu0 0.0
    %569 = vmatpush1.msra.mxu0 0.0
    %570 = vmatprep.subr.mxu0 0.0
    %571 = vmatpush1.msra.mxu0 0.0
    %572 = vmatprep.subr.mxu0 0.0
    %573 = vmatpush1.msra.mxu0 0.0
    %574 = vmatprep.subr.mxu0 0.0
    %575 = vmatpush1.msra.mxu0 0.0
    %576 = vmatprep.subr.mxu0 0.0
    %577 = vmatpush1.msra.mxu0 0.0
    %578 = vmatprep.subr.mxu0 0.0
    %579 = vmatpush1.msra.mxu0 0.0
    %580 = vmatprep.subr.mxu0 0.0
    %581 = vmatpush1.msra.mxu0 0.0
    %582 = vmatprep.subr.mxu0 0.0
    %583 = vmatpush1.msra.mxu0 0.0
    %584 = vmatprep.subr.mxu0 0.0
    %585 = vmatpush1.msra.mxu0 0.0
    %586 = vmatprep.subr.mxu0 0.0
    %587 = vmatpush1.msra.mxu0 0.0
    %588 = vmatprep.subr.mxu0 0.0
    %589 = vmatpush1.msra.mxu0 0.0
    %590 = vmatprep.subr.mxu0 0.0
    %591 = vmatpush1.msra.mxu0 0.0
    %592 = vmatprep.subr.mxu0 0.0
    %593 = vmatpush1.msra.mxu0 %v138
    %594 = vmatprep.subr.mxu0 0.0
    %595 = vmatpush1.msra.mxu0 %v137
    %596 = vmatprep.subr.mxu0 0.0
    %597 = vmatpush1.msra.mxu0 %v136
    %598 = vmatprep.subr.mxu0 0.0
    %599 = vmatpush1.msra.mxu0 %v135
    %600 = vmatprep.subr.mxu0 0.0
    %601 = vmatpush2.msra.mxu0 0.0
    %602 = vmatprep.subr.mxu0 0.0
    %603 = vmatpush2.msra.mxu0 0.0
    %604 = vmatprep.subr.mxu0 0.0
    %605 = vmatpush2.msra.mxu0 0.0
    %606 = vmatprep.subr.mxu0 0.0
    %607 = vmatpush2.msra.mxu0 0.0
    %608 = vmatprep.subr.mxu0 0.0
    %609 = vmatpush2.msra.mxu0 0.0
    %610 = vmatprep.subr.mxu0 0.0
    %611 = vmatpush2.msra.mxu0 0.0
    %612 = vmatprep.subr.mxu0 0.0
    %613 = vmatpush2.msra.mxu0 0.0
    %614 = vmatprep.subr.mxu0 0.0
    %615 = vmatpush2.msra.mxu0 0.0
    %616 = vmatprep.subr.mxu0 0.0
    %617 = vmatpush2.msra.mxu0 0.0
    %618 = vmatprep.subr.mxu0 0.0
    %619 = vmatpush2.msra.mxu0 0.0
    %620 = vmatprep.subr.mxu0 0.0
    %621 = vmatpush2.msra.mxu0 0.0
    %622 = vmatprep.subr.mxu0 0.0
    %623 = vmatpush2.msra.mxu0 0.0
    %624 = vmatprep.subr.mxu0 0.0
    %625 = vmatpush2.msra.mxu0 0.0
    %626 = vmatprep.subr.mxu0 0.0
    %627 = vmatpush2.msra.mxu0 0.0
    %628 = vmatprep.subr.mxu0 0.0
    %629 = vmatpush2.msra.mxu0 0.0
    %630 = vmatprep.subr.mxu0 0.0
    %631 = vmatpush2.msra.mxu0 0.0
    %632 = vmatprep.mubr.f32.mxu0 0.0
    %633 = vmatmul.mubr.f32.gmra.mxu0 %v566
    %v634 = vpop.f32.mrf.mxu0
    %v635 = vadd.f32 0.0, %v634
    %v636 = vpop.f32.mrf.mxu0
    %637 = vdwg.mxu0
    %v638 = vadd.f32 %v322, %v635
    %v639 = vxor.u32 %v638, 2147483648
    %v640 = vmul.f32 %v639, 1.442695
    %v641 = vpow.pop %v640
    %v642 = vadd.f32 %v641, 1.0
    %v643 = vrcp.pop %v642
    %v644 = vmul.f32 1.0, %v643
    %v645 = vtanh.pop %v638
    %v646 = vmul.f32 %v644, %v549
    %648 = vrot.lane.b32.xlu0 %v645, 64
    %v649 = vpop.permute.xlu0 %648
    %v651 = vmul.f32 %v644, %v649
    %653 = vrot.lane.b32.xlu0 %v651, 32
    %v654 = vpop.permute.xlu0 %653
    %v656 = vadd.f32 %v646, %v654
    %v657 = vtanh.pop %v656
    %659 = vrot.lane.b32.xlu0 %v657, 64
    %v660 = vpop.permute.xlu0 %659
    %v662 = vmul.f32 %v644, %v660
    %v665 = vunpack.c.l.s4 1983009808
    %v666 = vunpack.c.0.s8 %v665
    %v667 = vlaneseq
    %v668 = vshrl.u32 %v667, 7
    %v669 = vsub.s32 %v666, %v668
    %v670 = vrot.slane %v662, %v669
    %671 = vrot.lane.b32.xlu0 %v670, 32
    %v672 = vpop.permute.xlu0 %671
    %v673 = vsel %vm350, %v672, 0
    %675 = vmatprep.subr.mxu0 0.0
    %676 = vmatpush1.msra.mxu0 0.0
    %677 = vmatprep.subr.mxu0 0.0
    %678 = vmatpush1.msra.mxu0 0.0
    %679 = vmatprep.subr.mxu0 0.0
    %680 = vmatpush1.msra.mxu0 0.0
    %681 = vmatprep.subr.mxu0 0.0
    %682 = vmatpush1.msra.mxu0 0.0
    %683 = vmatprep.subr.mxu0 0.0
    %684 = vmatpush1.msra.mxu0 0.0
    %685 = vmatprep.subr.mxu0 0.0
    %686 = vmatpush1.msra.mxu0 0.0
    %687 = vmatprep.subr.mxu0 0.0
    %688 = vmatpush1.msra.mxu0 0.0
    %689 = vmatprep.subr.mxu0 0.0
    %690 = vmatpush1.msra.mxu0 0.0
    %691 = vmatprep.subr.mxu0 0.0
    %692 = vmatpush1.msra.mxu0 0.0
    %693 = vmatprep.subr.mxu0 0.0
    %694 = vmatpush1.msra.mxu0 0.0
    %695 = vmatprep.subr.mxu0 0.0
    %696 = vmatpush1.msra.mxu0 0.0
    %697 = vmatprep.subr.mxu0 0.0
    %698 = vmatpush1.msra.mxu0 0.0
    %699 = vmatprep.subr.mxu0 0.0
    %700 = vmatpush1.msra.mxu0 %v138
    %701 = vmatprep.subr.mxu0 0.0
    %702 = vmatpush1.msra.mxu0 %v137
    %703 = vmatprep.subr.mxu0 0.0
    %704 = vmatpush1.msra.mxu0 %v136
    %705 = vmatprep.subr.mxu0 0.0
    %706 = vmatpush1.msra.mxu0 %v135
    %707 = vmatprep.subr.mxu0 0.0
    %708 = vmatpush2.msra.mxu0 0.0
    %709 = vmatprep.subr.mxu0 0.0
    %710 = vmatpush2.msra.mxu0 0.0
    %711 = vmatprep.subr.mxu0 0.0
    %712 = vmatpush2.msra.mxu0 0.0
    %713 = vmatprep.subr.mxu0 0.0
    %714 = vmatpush2.msra.mxu0 0.0
    %715 = vmatprep.subr.mxu0 0.0
    %716 = vmatpush2.msra.mxu0 0.0
    %717 = vmatprep.subr.mxu0 0.0
    %718 = vmatpush2.msra.mxu0 0.0
    %719 = vmatprep.subr.mxu0 0.0
    %720 = vmatpush2.msra.mxu0 0.0
    %721 = vmatprep.subr.mxu0 0.0
    %722 = vmatpush2.msra.mxu0 0.0
    %723 = vmatprep.subr.mxu0 0.0
    %724 = vmatpush2.msra.mxu0 0.0
    %725 = vmatprep.subr.mxu0 0.0
    %726 = vmatpush2.msra.mxu0 0.0
    %727 = vmatprep.subr.mxu0 0.0
    %728 = vmatpush2.msra.mxu0 0.0
    %729 = vmatprep.subr.mxu0 0.0
    %730 = vmatpush2.msra.mxu0 0.0
    %731 = vmatprep.subr.mxu0 0.0
    %732 = vmatpush2.msra.mxu0 0.0
    %733 = vmatprep.subr.mxu0 0.0
    %734 = vmatpush2.msra.mxu0 0.0
    %735 = vmatprep.subr.mxu0 0.0
    %736 = vmatpush2.msra.mxu0 0.0
    %737 = vmatprep.subr.mxu0 0.0
    %738 = vmatpush2.msra.mxu0 0.0
    %739 = vmatprep.mubr.f32.mxu0 0.0
    %740 = vmatmul.mubr.f32.gmra.mxu0 %v673
    %v741 = vpop.f32.mrf.mxu0
    %v742 = vadd.f32 0.0, %v741
    %v743 = vpop.f32.mrf.mxu0
    %744 = vdwg.mxu0
    %v745 = vadd.f32 %v324, %v742
    %v746 = vxor.u32 %v745, 2147483648
    %v747 = vmul.f32 %v746, 1.442695
    %v748 = vpow.pop %v747
    %v749 = vadd.f32 %v748, 1.0
    %v750 = vrcp.pop %v749
    %v751 = vmul.f32 1.0, %v750
    %v752 = vtanh.pop %v745
    %v753 = vmul.f32 %v751, %v656
    %755 = vrot.lane.b32.xlu0 %v752, 64
    %v756 = vpop.permute.xlu0 %755
    %v758 = vmul.f32 %v751, %v756
    %760 = vrot.lane.b32.xlu0 %v758, 32
    %v761 = vpop.permute.xlu0 %760
    %v763 = vadd.f32 %v753, %v761
    %v764 = vtanh.pop %v763
    %766 = vrot.lane.b32.xlu0 %v764, 64
    %v767 = vpop.permute.xlu0 %766
    %v769 = vmul.f32 %v751, %v767
    %v772 = vunpack.c.l.s4 1983009808
    %v773 = vunpack.c.0.s8 %v772
    %v774 = vlaneseq
    %v775 = vshrl.u32 %v774, 7
    %v776 = vsub.s32 %v773, %v775
    %v777 = vrot.slane %v769, %v776
    %778 = vrot.lane.b32.xlu0 %v777, 32
    %v779 = vpop.permute.xlu0 %778
    %v780 = vsel %vm350, %v779, 0
    %782 = vmatprep.subr.mxu0 0.0
    %783 = vmatpush1.msra.mxu0 0.0
    %784 = vmatprep.subr.mxu0 0.0
    %785 = vmatpush1.msra.mxu0 0.0
    %786 = vmatprep.subr.mxu0 0.0
    %787 = vmatpush1.msra.mxu0 0.0
    %788 = vmatprep.subr.mxu0 0.0
    %789 = vmatpush1.msra.mxu0 0.0
    %790 = vmatprep.subr.mxu0 0.0
    %791 = vmatpush1.msra.mxu0 0.0
    %792 = vmatprep.subr.mxu0 0.0
    %793 = vmatpush1.msra.mxu0 0.0
    %794 = vmatprep.subr.mxu0 0.0
    %795 = vmatpush1.msra.mxu0 0.0
    %796 = vmatprep.subr.mxu0 0.0
    %797 = vmatpush1.msra.mxu0 0.0
    %798 = vmatprep.subr.mxu0 0.0
    %799 = vmatpush1.msra.mxu0 0.0
    %800 = vmatprep.subr.mxu0 0.0
    %801 = vmatpush1.msra.mxu0 0.0
    %802 = vmatprep.subr.mxu0 0.0
    %803 = vmatpush1.msra.mxu0 0.0
    %804 = vmatprep.subr.mxu0 0.0
    %805 = vmatpush1.msra.mxu0 0.0
    %806 = vmatprep.subr.mxu0 0.0
    %807 = vmatpush1.msra.mxu0 %v138
    %808 = vmatprep.subr.mxu0 0.0
    %809 = vmatpush1.msra.mxu0 %v137
    %810 = vmatprep.subr.mxu0 0.0
    %811 = vmatpush1.msra.mxu0 %v136
    %812 = vmatprep.subr.mxu0 0.0
    %813 = vmatpush1.msra.mxu0 %v135
    %814 = vmatprep.subr.mxu0 0.0
    %815 = vmatpush2.msra.mxu0 0.0
    %816 = vmatprep.subr.mxu0 0.0
    %817 = vmatpush2.msra.mxu0 0.0
    %818 = vmatprep.subr.mxu0 0.0
    %819 = vmatpush2.msra.mxu0 0.0
    %820 = vmatprep.subr.mxu0 0.0
    %821 = vmatpush2.msra.mxu0 0.0
    %822 = vmatprep.subr.mxu0 0.0
    %823 = vmatpush2.msra.mxu0 0.0
    %824 = vmatprep.subr.mxu0 0.0
    %825 = vmatpush2.msra.mxu0 0.0
    %826 = vmatprep.subr.mxu0 0.0
    %827 = vmatpush2.msra.mxu0 0.0
    %828 = vmatprep.subr.mxu0 0.0
    %829 = vmatpush2.msra.mxu0 0.0
    %830 = vmatprep.subr.mxu0 0.0
    %831 = vmatpush2.msra.mxu0 0.0
    %832 = vmatprep.subr.mxu0 0.0
    %833 = vmatpush2.msra.mxu0 0.0
    %834 = vmatprep.subr.mxu0 0.0
    %835 = vmatpush2.msra.mxu0 0.0
    %836 = vmatprep.subr.mxu0 0.0
    %837 = vmatpush2.msra.mxu0 0.0
    %838 = vmatprep.subr.mxu0 0.0
    %839 = vmatpush2.msra.mxu0 0.0
    %840 = vmatprep.subr.mxu0 0.0
    %841 = vmatpush2.msra.mxu0 0.0
    %842 = vmatprep.subr.mxu0 0.0
    %843 = vmatpush2.msra.mxu0 0.0
    %844 = vmatprep.subr.mxu0 0.0
    %845 = vmatpush2.msra.mxu0 0.0
    %846 = vmatprep.mubr.f32.mxu0 0.0
    %847 = vmatmul.mubr.f32.gmra.mxu0 %v780
    %v848 = vpop.f32.mrf.mxu0
    %v849 = vadd.f32 0.0, %v848
    %v850 = vpop.f32.mrf.mxu0
    %851 = vdwg.mxu0
    %v852 = vadd.f32 %v332, %v849
    %v853 = vxor.u32 %v852, 2147483648
    %v854 = vmul.f32 %v853, 1.442695
    %v855 = vpow.pop %v854
    %v856 = vadd.f32 %v855, 1.0
    %v857 = vrcp.pop %v856
    %v858 = vmul.f32 1.0, %v857
    %v859 = vtanh.pop %v852
    %v860 = vmul.f32 %v858, %v763
    %862 = vrot.lane.b32.xlu0 %v859, 64
    %v863 = vpop.permute.xlu0 %862
    %v865 = vmul.f32 %v858, %v863
    %867 = vrot.lane.b32.xlu0 %v865, 32
    %v868 = vpop.permute.xlu0 %867
    %v870 = vadd.f32 %v860, %v868
    %v871 = vtanh.pop %v870
    %873 = vrot.lane.b32.xlu0 %v871, 64
    %v874 = vpop.permute.xlu0 %873
    %v876 = vmul.f32 %v858, %v874
    %v879 = vunpack.c.l.s4 1983009808
    %v880 = vunpack.c.0.s8 %v879
    %v881 = vlaneseq
    %v882 = vshrl.u32 %v881, 7
    %v883 = vsub.s32 %v880, %v882
    %v884 = vrot.slane %v876, %v883
    %885 = vrot.lane.b32.xlu0 %v884, 32
    %v886 = vpop.permute.xlu0 %885
    %v887 = vsel %vm350, %v886, 0
    %889 = vmatprep.subr.mxu0 0.0
    %890 = vmatpush1.msra.mxu0 0.0
    %891 = vmatprep.subr.mxu0 0.0
    %892 = vmatpush1.msra.mxu0 0.0
    %893 = vmatprep.subr.mxu0 0.0
    %894 = vmatpush1.msra.mxu0 0.0
    %895 = vmatprep.subr.mxu0 0.0
    %896 = vmatpush1.msra.mxu0 0.0
    %897 = vmatprep.subr.mxu0 0.0
    %898 = vmatpush1.msra.mxu0 0.0
    %899 = vmatprep.subr.mxu0 0.0
    %900 = vmatpush1.msra.mxu0 0.0
    %901 = vmatprep.subr.mxu0 0.0
    %902 = vmatpush1.msra.mxu0 0.0
    %903 = vmatprep.subr.mxu0 0.0
    %904 = vmatpush1.msra.mxu0 0.0
    %905 = vmatprep.subr.mxu0 0.0
    %906 = vmatpush1.msra.mxu0 0.0
    %907 = vmatprep.subr.mxu0 0.0
    %908 = vmatpush1.msra.mxu0 0.0
    %909 = vmatprep.subr.mxu0 0.0
    %910 = vmatpush1.msra.mxu0 0.0
    %911 = vmatprep.subr.mxu0 0.0
    %912 = vmatpush1.msra.mxu0 0.0
    %913 = vmatprep.subr.mxu0 0.0
    %914 = vmatpush1.msra.mxu0 %v138
    %915 = vmatprep.subr.mxu0 0.0
    %916 = vmatpush1.msra.mxu0 %v137
    %917 = vmatprep.subr.mxu0 0.0
    %918 = vmatpush1.msra.mxu0 %v136
    %919 = vmatprep.subr.mxu0 0.0
    %920 = vmatpush1.msra.mxu0 %v135
    %921 = vmatprep.subr.mxu0 0.0
    %922 = vmatpush2.msra.mxu0 0.0
    %923 = vmatprep.subr.mxu0 0.0
    %924 = vmatpush2.msra.mxu0 0.0
    %925 = vmatprep.subr.mxu0 0.0
    %926 = vmatpush2.msra.mxu0 0.0
    %927 = vmatprep.subr.mxu0 0.0
    %928 = vmatpush2.msra.mxu0 0.0
    %929 = vmatprep.subr.mxu0 0.0
    %930 = vmatpush2.msra.mxu0 0.0
    %931 = vmatprep.subr.mxu0 0.0
    %932 = vmatpush2.msra.mxu0 0.0
    %933 = vmatprep.subr.mxu0 0.0
    %934 = vmatpush2.msra.mxu0 0.0
    %935 = vmatprep.subr.mxu0 0.0
    %936 = vmatpush2.msra.mxu0 0.0
    %937 = vmatprep.subr.mxu0 0.0
    %938 = vmatpush2.msra.mxu0 0.0
    %939 = vmatprep.subr.mxu0 0.0
    %940 = vmatpush2.msra.mxu0 0.0
    %941 = vmatprep.subr.mxu0 0.0
    %942 = vmatpush2.msra.mxu0 0.0
    %943 = vmatprep.subr.mxu0 0.0
    %944 = vmatpush2.msra.mxu0 0.0
    %945 = vmatprep.subr.mxu0 0.0
    %946 = vmatpush2.msra.mxu0 0.0
    %947 = vmatprep.subr.mxu0 0.0
    %948 = vmatpush2.msra.mxu0 0.0
    %949 = vmatprep.subr.mxu0 0.0
    %950 = vmatpush2.msra.mxu0 0.0
    %951 = vmatprep.subr.mxu0 0.0
    %952 = vmatpush2.msra.mxu0 0.0
    %953 = vmatprep.mubr.f32.mxu0 0.0
    %954 = vmatmul.mubr.f32.gmra.mxu0 %v887
    %v955 = vpop.f32.mrf.mxu0
    %v956 = vadd.f32 0.0, %v955
    %v957 = vpop.f32.mrf.mxu0
    %958 = vdwg.mxu0
    %v959 = vadd.f32 %v340, %v956
    %v960 = vxor.u32 %v959, 2147483648
    %v961 = vmul.f32 %v960, 1.442695
    %v962 = vpow.pop %v961
    %v963 = vadd.f32 %v962, 1.0
    %v964 = vrcp.pop %v963
    %v965 = vmul.f32 1.0, %v964
    %v966 = vtanh.pop %v959
    %v967 = vmul.f32 %v965, %v870
    %969 = vrot.lane.b32.xlu0 %v966, 64
    %v970 = vpop.permute.xlu0 %969
    %v972 = vmul.f32 %v965, %v970
    %974 = vrot.lane.b32.xlu0 %v972, 32
    %v975 = vpop.permute.xlu0 %974
    %v977 = vadd.f32 %v967, %v975
    %v978 = vtanh.pop %v977
    %980 = vrot.lane.b32.xlu0 %v978, 64
    %v981 = vpop.permute.xlu0 %980
    %v983 = vmul.f32 %v965, %v981
    %v986 = vunpack.c.l.s4 1983009808
    %v987 = vunpack.c.0.s8 %v986
    %v988 = vlaneseq
    %v989 = vshrl.u32 %v988, 7
    %v990 = vsub.s32 %v987, %v989
    %v991 = vrot.slane %v983, %v990
    %992 = vrot.lane.b32.xlu0 %v991, 32
    %v993 = vpop.permute.xlu0 %992
    %v994 = vsel %vm350, %v993, 0
    %996 = vmatprep.subr.mxu0 0.0
    %997 = vmatpush1.msra.mxu0 0.0
    %998 = vmatprep.subr.mxu0 0.0
    %999 = vmatpush1.msra.mxu0 0.0
    %1000 = vmatprep.subr.mxu0 0.0
    %1001 = vmatpush1.msra.mxu0 0.0
    %1002 = vmatprep.subr.mxu0 0.0
    %1003 = vmatpush1.msra.mxu0 0.0
    %1004 = vmatprep.subr.mxu0 0.0
    %1005 = vmatpush1.msra.mxu0 0.0
    %1006 = vmatprep.subr.mxu0 0.0
    %1007 = vmatpush1.msra.mxu0 0.0
    %1008 = vmatprep.subr.mxu0 0.0
    %1009 = vmatpush1.msra.mxu0 0.0
    %1010 = vmatprep.subr.mxu0 0.0
    %1011 = vmatpush1.msra.mxu0 0.0
    %1012 = vmatprep.subr.mxu0 0.0
    %1013 = vmatpush1.msra.mxu0 0.0
    %1014 = vmatprep.subr.mxu0 0.0
    %1015 = vmatpush1.msra.mxu0 0.0
    %1016 = vmatprep.subr.mxu0 0.0
    %1017 = vmatpush1.msra.mxu0 0.0
    %1018 = vmatprep.subr.mxu0 0.0
    %1019 = vmatpush1.msra.mxu0 0.0
    %1020 = vmatprep.subr.mxu0 0.0
    %1021 = vmatpush1.msra.mxu0 %v138
    %1022 = vmatprep.subr.mxu0 0.0
    %1023 = vmatpush1.msra.mxu0 %v137
    %1024 = vmatprep.subr.mxu0 0.0
    %1025 = vmatpush1.msra.mxu0 %v136
    %1026 = vmatprep.subr.mxu0 0.0
    %1027 = vmatpush1.msra.mxu0 %v135
    %1028 = vmatprep.subr.mxu0 0.0
    %1029 = vmatpush2.msra.mxu0 0.0
    %1030 = vmatprep.subr.mxu0 0.0
    %1031 = vmatpush2.msra.mxu0 0.0
    %1032 = vmatprep.subr.mxu0 0.0
    %1033 = vmatpush2.msra.mxu0 0.0
    %1034 = vmatprep.subr.mxu0 0.0
    %1035 = vmatpush2.msra.mxu0 0.0
    %1036 = vmatprep.subr.mxu0 0.0
    %1037 = vmatpush2.msra.mxu0 0.0
    %1038 = vmatprep.subr.mxu0 0.0
    %1039 = vmatpush2.msra.mxu0 0.0
    %1040 = vmatprep.subr.mxu0 0.0
    %1041 = vmatpush2.msra.mxu0 0.0
    %1042 = vmatprep.subr.mxu0 0.0
    %1043 = vmatpush2.msra.mxu0 0.0
    %1044 = vmatprep.subr.mxu0 0.0
    %1045 = vmatpush2.msra.mxu0 0.0
    %1046 = vmatprep.subr.mxu0 0.0
    %1047 = vmatpush2.msra.mxu0 0.0
    %1048 = vmatprep.subr.mxu0 0.0
    %1049 = vmatpush2.msra.mxu0 0.0
    %1050 = vmatprep.subr.mxu0 0.0
    %1051 = vmatpush2.msra.mxu0 0.0
    %1052 = vmatprep.subr.mxu0 0.0
    %1053 = vmatpush2.msra.mxu0 0.0
    %1054 = vmatprep.subr.mxu0 0.0
    %1055 = vmatpush2.msra.mxu0 0.0
    %1056 = vmatprep.subr.mxu0 0.0
    %1057 = vmatpush2.msra.mxu0 0.0
    %1058 = vmatprep.subr.mxu0 0.0
    %1059 = vmatpush2.msra.mxu0 0.0
    %1060 = vmatprep.mubr.f32.mxu0 0.0
    %1061 = vmatmul.mubr.f32.gmra.mxu0 %v994
    %v1062 = vpop.f32.mrf.mxu0
    %v1063 = vadd.f32 0.0, %v1062
    %v1064 = vpop.f32.mrf.mxu0
    %1065 = vdwg.mxu0
    %v1066 = vadd.f32 %v339, %v1063
    %v1067 = vxor.u32 %v1066, 2147483648
    %v1068 = vmul.f32 %v1067, 1.442695
    %v1069 = vpow.pop %v1068
    %v1070 = vadd.f32 %v1069, 1.0
    %v1071 = vrcp.pop %v1070
    %v1072 = vmul.f32 1.0, %v1071
    %v1073 = vtanh.pop %v1066
    %v1074 = vmul.f32 %v1072, %v977
    %1076 = vrot.lane.b32.xlu0 %v1073, 64
    %v1077 = vpop.permute.xlu0 %1076
    %v1079 = vmul.f32 %v1072, %v1077
    %1081 = vrot.lane.b32.xlu0 %v1079, 32
    %v1082 = vpop.permute.xlu0 %1081
    %v1084 = vadd.f32 %v1074, %v1082
    %v1085 = vtanh.pop %v1084
    %1087 = vrot.lane.b32.xlu0 %v1085, 64
    %v1088 = vpop.permute.xlu0 %1087
    %v1090 = vmul.f32 %v1072, %v1088
    %v1093 = vunpack.c.l.s4 1983009808
    %v1094 = vunpack.c.0.s8 %v1093
    %v1095 = vlaneseq
    %v1096 = vshrl.u32 %v1095, 7
    %v1097 = vsub.s32 %v1094, %v1096
    %v1098 = vrot.slane %v1090, %v1097
    %1099 = vrot.lane.b32.xlu0 %v1098, 32
    %v1100 = vpop.permute.xlu0 %1099
    %v1101 = vsel %vm350, %v1100, 0
    %1103 = vmatprep.subr.mxu0 0.0
    %1104 = vmatpush1.msra.mxu0 0.0
    %1105 = vmatprep.subr.mxu0 0.0
    %1106 = vmatpush1.msra.mxu0 0.0
    %1107 = vmatprep.subr.mxu0 0.0
    %1108 = vmatpush1.msra.mxu0 0.0
    %1109 = vmatprep.subr.mxu0 0.0
    %1110 = vmatpush1.msra.mxu0 0.0
    %1111 = vmatprep.subr.mxu0 0.0
    %1112 = vmatpush1.msra.mxu0 0.0
    %1113 = vmatprep.subr.mxu0 0.0
    %1114 = vmatpush1.msra.mxu0 0.0
    %1115 = vmatprep.subr.mxu0 0.0
    %1116 = vmatpush1.msra.mxu0 0.0
    %1117 = vmatprep.subr.mxu0 0.0
    %1118 = vmatpush1.msra.mxu0 0.0
    %1119 = vmatprep.subr.mxu0 0.0
    %1120 = vmatpush1.msra.mxu0 0.0
    %1121 = vmatprep.subr.mxu0 0.0
    %1122 = vmatpush1.msra.mxu0 0.0
    %1123 = vmatprep.subr.mxu0 0.0
    %1124 = vmatpush1.msra.mxu0 0.0
    %1125 = vmatprep.subr.mxu0 0.0
    %1126 = vmatpush1.msra.mxu0 0.0
    %1127 = vmatprep.subr.mxu0 0.0
    %1128 = vmatpush1.msra.mxu0 %v138
    %1129 = vmatprep.subr.mxu0 0.0
    %1130 = vmatpush1.msra.mxu0 %v137
    %1131 = vmatprep.subr.mxu0 0.0
    %1132 = vmatpush1.msra.mxu0 %v136
    %1133 = vmatprep.subr.mxu0 0.0
    %1134 = vmatpush1.msra.mxu0 %v135
    %1135 = vmatprep.subr.mxu0 0.0
    %1136 = vmatpush2.msra.mxu0 0.0
    %1137 = vmatprep.subr.mxu0 0.0
    %1138 = vmatpush2.msra.mxu0 0.0
    %1139 = vmatprep.subr.mxu0 0.0
    %1140 = vmatpush2.msra.mxu0 0.0
    %1141 = vmatprep.subr.mxu0 0.0
    %1142 = vmatpush2.msra.mxu0 0.0
    %1143 = vmatprep.subr.mxu0 0.0
    %1144 = vmatpush2.msra.mxu0 0.0
    %1145 = vmatprep.subr.mxu0 0.0
    %1146 = vmatpush2.msra.mxu0 0.0
    %1147 = vmatprep.subr.mxu0 0.0
    %1148 = vmatpush2.msra.mxu0 0.0
    %1149 = vmatprep.subr.mxu0 0.0
    %1150 = vmatpush2.msra.mxu0 0.0
    %1151 = vmatprep.subr.mxu0 0.0
    %1152 = vmatpush2.msra.mxu0 0.0
    %1153 = vmatprep.subr.mxu0 0.0
    %1154 = vmatpush2.msra.mxu0 0.0
    %1155 = vmatprep.subr.mxu0 0.0
    %1156 = vmatpush2.msra.mxu0 0.0
    %1157 = vmatprep.subr.mxu0 0.0
    %1158 = vmatpush2.msra.mxu0 0.0
    %1159 = vmatprep.subr.mxu0 0.0
    %1160 = vmatpush2.msra.mxu0 0.0
    %1161 = vmatprep.subr.mxu0 0.0
    %1162 = vmatpush2.msra.mxu0 0.0
    %1163 = vmatprep.subr.mxu0 0.0
    %1164 = vmatpush2.msra.mxu0 0.0
    %1165 = vmatprep.subr.mxu0 0.0
    %1166 = vmatpush2.msra.mxu0 0.0
    %1167 = vmatprep.mubr.f32.mxu0 0.0
    %1168 = vmatmul.mubr.f32.gmra.mxu0 %v1101
    %v1169 = vpop.f32.mrf.mxu0
    %v1170 = vadd.f32 0.0, %v1169
    %v1171 = vpop.f32.mrf.mxu0
    %1172 = vdwg.mxu0
    %v1173 = vadd.f32 %v341, %v1170
    %v1174 = vxor.u32 %v1173, 2147483648
    %v1175 = vmul.f32 %v1174, 1.442695
    %v1176 = vpow.pop %v1175
    %v1177 = vadd.f32 %v1176, 1.0
    %v1178 = vrcp.pop %v1177
    %v1179 = vmul.f32 1.0, %v1178
    %v1180 = vtanh.pop %v1173
    %v1181 = vmul.f32 %v1179, %v1084
    %1183 = vrot.lane.b32.xlu0 %v1180, 64
    %v1184 = vpop.permute.xlu0 %1183
    %v1186 = vmul.f32 %v1179, %v1184
    %1188 = vrot.lane.b32.xlu0 %v1186, 32
    %v1189 = vpop.permute.xlu0 %1188
    %v1191 = vadd.f32 %v1181, %v1189
    %v1192 = vtanh.pop %v1191
    %1194 = vrot.lane.b32.xlu0 %v1192, 64
    %v1195 = vpop.permute.xlu0 %1194
    %v1197 = vmul.f32 %v1179, %v1195
    %v1199 = vcombine.low %v448, %v555
    %v1200 = vcombine.low %v662, %v769
    %v1202 = vunpack.c.l.s4 1983009808
    %v1203 = vunpack.c.0.s8 %v1202
    %v1204 = vlaneseq
    %v1205 = vshrl.u32 %v1204, 7
    %v1206 = vsub.s32 %v1203, %v1205
    %v1207 = vrot.slane %v1199, %v1206
    %v1209 = vunpack.c.l.s4 1983009808
    %v1210 = vunpack.c.0.s8 %v1209
    %v1211 = vlaneseq
    %v1212 = vshrl.u32 %v1211, 7
    %v1213 = vsub.s32 %v1210, %v1212
    %v1214 = vrot.slane %v1200, %v1213
    %v1215 = vcombine.low %v1207, %v1214
    %v1216 = vcombine.low %v876, %v983
    %v1217 = vcombine.low %v1090, %v1197
    %v1219 = vunpack.c.l.s4 1983009808
    %v1220 = vunpack.c.0.s8 %v1219
    %v1221 = vlaneseq
    %v1222 = vshrl.u32 %v1221, 7
    %v1223 = vsub.s32 %v1220, %v1222
    %v1224 = vrot.slane %v1216, %v1223
    %v1226 = vunpack.c.l.s4 1983009808
    %v1227 = vunpack.c.0.s8 %v1226
    %v1228 = vlaneseq
    %v1229 = vshrl.u32 %v1228, 7
    %v1230 = vsub.s32 %v1227, %v1229
    %v1231 = vrot.slane %v1217, %v1230
    %v1232 = vcombine.low %v1224, %v1231
    %1233 = vrot.lane.b32.xlu0 %v1215, 32
    %v1234 = vpop.permute.xlu0 %1233
    %1235 = vrot.lane.b32.xlu0 %v1232, 32
    %v1236 = vpop.permute.xlu0 %1235
    %v1237 = vsel %vm350, %v1234, 0
    %v1239 = vsel %vm350, %v1236, 0
    %1241 = vmatprep.subr.mxu0 0.0
    %1242 = vmatpush1.msra.mxu0 0.0
    %1243 = vmatprep.subr.mxu0 0.0
    %1244 = vmatpush1.msra.mxu0 0.0
    %1245 = vmatprep.subr.mxu0 0.0
    %1246 = vmatpush1.msra.mxu0 0.0
    %1247 = vmatprep.subr.mxu0 0.0
    %1248 = vmatpush1.msra.mxu0 0.0
    %1249 = vmatprep.subr.mxu0 0.0
    %1250 = vmatpush1.msra.mxu0 0.0
    %1251 = vmatprep.subr.mxu0 0.0
    %1252 = vmatpush1.msra.mxu0 0.0
    %1253 = vmatprep.subr.mxu0 0.0
    %1254 = vmatpush1.msra.mxu0 0.0
    %1255 = vmatprep.subr.mxu0 0.0
    %1256 = vmatpush1.msra.mxu0 0.0
    %1257 = vmatprep.subr.mxu0 0.0
    %1258 = vmatpush1.msra.mxu0 0.0
    %1259 = vmatprep.subr.mxu0 0.0
    %1260 = vmatpush1.msra.mxu0 0.0
    %1261 = vmatprep.subr.mxu0 0.0
    %1262 = vmatpush1.msra.mxu0 0.0
    %1263 = vmatprep.subr.mxu0 0.0
    %1264 = vmatpush1.msra.mxu0 0.0
    %1265 = vmatprep.subr.mxu0 0.0
    %1266 = vmatpush1.msra.mxu0 %v142
    %1267 = vmatprep.subr.mxu0 0.0
    %1268 = vmatpush1.msra.mxu0 %v141
    %1269 = vmatprep.subr.mxu0 0.0
    %1270 = vmatpush1.msra.mxu0 %v140
    %1271 = vmatprep.subr.mxu0 0.0
    %1272 = vmatpush1.msra.mxu0 %v139
    %1273 = vmatprep.subr.mxu0 0.0
    %1274 = vmatpush2.msra.mxu0 0.0
    %1275 = vmatprep.subr.mxu0 0.0
    %1276 = vmatpush2.msra.mxu0 0.0
    %1277 = vmatprep.subr.mxu0 0.0
    %1278 = vmatpush2.msra.mxu0 0.0
    %1279 = vmatprep.subr.mxu0 0.0
    %1280 = vmatpush2.msra.mxu0 0.0
    %1281 = vmatprep.subr.mxu0 0.0
    %1282 = vmatpush2.msra.mxu0 0.0
    %1283 = vmatprep.subr.mxu0 0.0
    %1284 = vmatpush2.msra.mxu0 0.0
    %1285 = vmatprep.subr.mxu0 0.0
    %1286 = vmatpush2.msra.mxu0 0.0
    %1287 = vmatprep.subr.mxu0 0.0
    %1288 = vmatpush2.msra.mxu0 0.0
    %1289 = vmatprep.subr.mxu0 0.0
    %1290 = vmatpush2.msra.mxu0 0.0
    %1291 = vmatprep.subr.mxu0 0.0
    %1292 = vmatpush2.msra.mxu0 0.0
    %1293 = vmatprep.subr.mxu0 0.0
    %1294 = vmatpush2.msra.mxu0 0.0
    %1295 = vmatprep.subr.mxu0 0.0
    %1296 = vmatpush2.msra.mxu0 0.0
    %1297 = vmatprep.subr.mxu0 0.0
    %1298 = vmatpush2.msra.mxu0 0.0
    %1299 = vmatprep.subr.mxu0 0.0
    %1300 = vmatpush2.msra.mxu0 0.0
    %1301 = vmatprep.subr.mxu0 0.0
    %1302 = vmatpush2.msra.mxu0 0.0
    %1303 = vmatprep.subr.mxu0 0.0
    %1304 = vmatpush2.msra.mxu0 0.0
    %1305 = vmatprep.mubr.f32.mxu0 0.0
    %1306 = vmatmul.mubr.f32.gmra.mxu0 %v1237
    %v1307 = vpop.f32.mrf.mxu0
    %v1308 = vadd.f32 0.0, %v1307
    %v1309 = vpop.f32.mrf.mxu0
    %1310 = vmatprep.mubr.f32.mxu0 0.0
    %1311 = vmatmul.mubr.f32.gmra.mxu0 %v1239
    %v1312 = vpop.f32.mrf.mxu0
    %v1313 = vadd.f32 0.0, %v1312
    %v1314 = vpop.f32.mrf.mxu0
    %1315 = vdwg.mxu0
    %v1317 = vsel %vm350, %v1308, 0
    %v1320 = vsel %vm350, %v1313, 0
    %1322 = vmatprep.subr.mxu0 0.0
    %1323 = vmatpush1.msra.mxu0 0.0
    %1324 = vmatprep.subr.mxu0 0.0
    %1325 = vmatpush1.msra.mxu0 0.0
    %1326 = vmatprep.subr.mxu0 0.0
    %1327 = vmatpush1.msra.mxu0 0.0
    %1328 = vmatprep.subr.mxu0 0.0
    %1329 = vmatpush1.msra.mxu0 0.0
    %1330 = vmatprep.subr.mxu0 0.0
    %1331 = vmatpush1.msra.mxu0 0.0
    %1332 = vmatprep.subr.mxu0 0.0
    %1333 = vmatpush1.msra.mxu0 0.0
    %1334 = vmatprep.subr.mxu0 0.0
    %1335 = vmatpush1.msra.mxu0 0.0
    %1336 = vmatprep.subr.mxu0 0.0
    %1337 = vmatpush1.msra.mxu0 0.0
    %1338 = vmatprep.subr.mxu0 0.0
    %1339 = vmatpush1.msra.mxu0 0.0
    %1340 = vmatprep.subr.mxu0 0.0
    %1341 = vmatpush1.msra.mxu0 0.0
    %1342 = vmatprep.subr.mxu0 0.0
    %1343 = vmatpush1.msra.mxu0 0.0
    %1344 = vmatprep.subr.mxu0 0.0
    %1345 = vmatpush1.msra.mxu0 0.0
    %1346 = vmatprep.subr.mxu0 0.0
    %1347 = vmatpush1.msra.mxu0 %v146
    %1348 = vmatprep.subr.mxu0 0.0
    %1349 = vmatpush1.msra.mxu0 %v145
    %1350 = vmatprep.subr.mxu0 0.0
    %1351 = vmatpush1.msra.mxu0 %v144
    %1352 = vmatprep.subr.mxu0 0.0
    %1353 = vmatpush1.msra.mxu0 %v143
    %1354 = vmatprep.subr.mxu0 0.0
    %1355 = vmatpush2.msra.mxu0 0.0
    %1356 = vmatprep.subr.mxu0 0.0
    %1357 = vmatpush2.msra.mxu0 0.0
    %1358 = vmatprep.subr.mxu0 0.0
    %1359 = vmatpush2.msra.mxu0 0.0
    %1360 = vmatprep.subr.mxu0 0.0
    %1361 = vmatpush2.msra.mxu0 0.0
    %1362 = vmatprep.subr.mxu0 0.0
    %1363 = vmatpush2.msra.mxu0 0.0
    %1364 = vmatprep.subr.mxu0 0.0
    %1365 = vmatpush2.msra.mxu0 0.0
    %1366 = vmatprep.subr.mxu0 0.0
    %1367 = vmatpush2.msra.mxu0 0.0
    %1368 = vmatprep.subr.mxu0 0.0
    %1369 = vmatpush2.msra.mxu0 0.0
    %1370 = vmatprep.subr.mxu0 0.0
    %1371 = vmatpush2.msra.mxu0 0.0
    %1372 = vmatprep.subr.mxu0 0.0
    %1373 = vmatpush2.msra.mxu0 0.0
    %1374 = vmatprep.subr.mxu0 0.0
    %1375 = vmatpush2.msra.mxu0 0.0
    %1376 = vmatprep.subr.mxu0 0.0
    %1377 = vmatpush2.msra.mxu0 0.0
    %1378 = vmatprep.subr.mxu0 0.0
    %1379 = vmatpush2.msra.mxu0 0.0
    %1380 = vmatprep.subr.mxu0 0.0
    %1381 = vmatpush2.msra.mxu0 0.0
    %1382 = vmatprep.subr.mxu0 0.0
    %1383 = vmatpush2.msra.mxu0 0.0
    %1384 = vmatprep.subr.mxu0 0.0
    %1385 = vmatpush2.msra.mxu0 0.0
    %1386 = vmatprep.mubr.f32.mxu0 0.0
    %1387 = vmatmul.mubr.f32.gmra.mxu0 %v1317
    %v1388 = vpop.f32.mrf.mxu0
    %v1389 = vadd.f32 0.0, %v1388
    %v1390 = vpop.f32.mrf.mxu0
    %1391 = vmatprep.mubr.f32.mxu0 0.0
    %1392 = vmatmul.mubr.f32.gmra.mxu0 %v1320
    %v1393 = vpop.f32.mrf.mxu0
    %v1394 = vadd.f32 0.0, %v1393
    %v1395 = vpop.f32.mrf.mxu0
    %1396 = vdwg.mxu0
    %v1399 = vcombine.high %v1389, %v1389
    %v1401 = vunpack.c.l.s4 1983009808
    %v1402 = vunpack.c.0.s8 %v1401
    %v1403 = vlaneseq
    %v1404 = vshrl.u32 %v1403, 7
    %v1405 = vsub.s32 %v1402, %v1404
    %v1406 = vrot.slane %v1389, %v1405
    %v1408 = vunpack.c.l.s4 1983009808
    %v1409 = vunpack.c.0.s8 %v1408
    %v1410 = vlaneseq
    %v1411 = vshrl.u32 %v1410, 7
    %v1412 = vsub.s32 %v1409, %v1411
    %v1413 = vrot.slane %v1399, %v1412
    %v1414 = vcombine.high %v1406, %v1406
    %v1415 = vcombine.high %v1413, %v1413
    %v1416 = vcombine.high %v1394, %v1394
    %v1418 = vunpack.c.l.s4 1983009808
    %v1419 = vunpack.c.0.s8 %v1418
    %v1420 = vlaneseq
    %v1421 = vshrl.u32 %v1420, 7
    %v1422 = vsub.s32 %v1419, %v1421
    %v1423 = vrot.slane %v1394, %v1422
    %v1425 = vunpack.c.l.s4 1983009808
    %v1426 = vunpack.c.0.s8 %v1425
    %v1427 = vlaneseq
    %v1428 = vshrl.u32 %v1427, 7
    %v1429 = vsub.s32 %v1426, %v1428
    %v1430 = vrot.slane %v1416, %v1429
    %v1431 = vcombine.high %v1423, %v1423
    %v1432 = vcombine.high %v1430, %v1430
    %1441 = vmatprep.subr.mxu0 0.0
    %1442 = vmatpush1.msra.mxu0 0.0
    %1443 = vmatprep.subr.mxu0 0.0
    %1444 = vmatpush1.msra.mxu0 0.0
    %1445 = vmatprep.subr.mxu0 0.0
    %1446 = vmatpush1.msra.mxu0 0.0
    %1447 = vmatprep.subr.mxu0 0.0
    %1448 = vmatpush1.msra.mxu0 0.0
    %1449 = vmatprep.subr.mxu0 0.0
    %1450 = vmatpush1.msra.mxu0 0.0
    %1451 = vmatprep.subr.mxu0 0.0
    %1452 = vmatpush1.msra.mxu0 0.0
    %1453 = vmatprep.subr.mxu0 0.0
    %1454 = vmatpush1.msra.mxu0 0.0
    %1455 = vmatprep.subr.mxu0 0.0
    %1456 = vmatpush1.msra.mxu0 0.0
    %1457 = vmatprep.subr.mxu0 0.0
    %1458 = vmatpush1.msra.mxu0 0.0
    %1459 = vmatprep.subr.mxu0 0.0
    %1460 = vmatpush1.msra.mxu0 0.0
    %1461 = vmatprep.subr.mxu0 0.0
    %1462 = vmatpush1.msra.mxu0 0.0
    %1463 = vmatprep.subr.mxu0 0.0
    %1464 = vmatpush1.msra.mxu0 0.0
    %1465 = vmatprep.subr.mxu0 0.0
    %1466 = vmatpush1.msra.mxu0 %v150
    %1467 = vmatprep.subr.mxu0 0.0
    %1468 = vmatpush1.msra.mxu0 %v149
    %1469 = vmatprep.subr.mxu0 0.0
    %1470 = vmatpush1.msra.mxu0 %v148
    %1471 = vmatprep.subr.mxu0 0.0
    %1472 = vmatpush1.msra.mxu0 %v147
    %1473 = vmatprep.subr.mxu0 0.0
    %1474 = vmatpush2.msra.mxu0 0.0
    %1475 = vmatprep.subr.mxu0 0.0
    %1476 = vmatpush2.msra.mxu0 0.0
    %1477 = vmatprep.subr.mxu0 0.0
    %1478 = vmatpush2.msra.mxu0 0.0
    %1479 = vmatprep.subr.mxu0 0.0
    %1480 = vmatpush2.msra.mxu0 0.0
    %1481 = vmatprep.subr.mxu0 0.0
    %1482 = vmatpush2.msra.mxu0 0.0
    %1483 = vmatprep.subr.mxu0 0.0
    %1484 = vmatpush2.msra.mxu0 0.0
    %1485 = vmatprep.subr.mxu0 0.0
    %1486 = vmatpush2.msra.mxu0 0.0
    %1487 = vmatprep.subr.mxu0 0.0
    %1488 = vmatpush2.msra.mxu0 0.0
    %1489 = vmatprep.subr.mxu0 0.0
    %1490 = vmatpush2.msra.mxu0 0.0
    %1491 = vmatprep.subr.mxu0 0.0
    %1492 = vmatpush2.msra.mxu0 0.0
    %1493 = vmatprep.subr.mxu0 0.0
    %1494 = vmatpush2.msra.mxu0 0.0
    %1495 = vmatprep.subr.mxu0 0.0
    %1496 = vmatpush2.msra.mxu0 0.0
    %1497 = vmatprep.subr.mxu0 0.0
    %1498 = vmatpush2.msra.mxu0 0.0
    %1499 = vmatprep.subr.mxu0 0.0
    %1500 = vmatpush2.msra.mxu0 0.0
    %1501 = vmatprep.subr.mxu0 0.0
    %1502 = vmatpush2.msra.mxu0 0.0
    %1503 = vmatprep.subr.mxu0 0.0
    %1504 = vmatpush2.msra.mxu0 0.0
    %1505 = vmatprep.mubr.f32.mxu0 0.0
    %1506 = vmatmul.mubr.f32.gmra.mxu0 %v352
    %v1507 = vpop.f32.mrf.mxu0
    %v1508 = vadd.f32 0.0, %v1507
    %v1509 = vpop.f32.mrf.mxu0
    %1510 = vdwg.mxu0
    %v1512 = vcombine.high %v1508, %v1508
    %v1514 = vunpack.c.l.s4 1983009808
    %v1515 = vunpack.c.0.s8 %v1514
    %v1516 = vlaneseq
    %v1517 = vshrl.u32 %v1516, 7
    %v1518 = vsub.s32 %v1515, %v1517
    %v1519 = vrot.slane %v1508, %v1518
    %v1521 = vunpack.c.l.s4 1983009808
    %v1522 = vunpack.c.0.s8 %v1521
    %v1523 = vlaneseq
    %v1524 = vshrl.u32 %v1523, 7
    %v1525 = vsub.s32 %v1522, %v1524
    %v1526 = vrot.slane %v1512, %v1525
    %v1527 = vcombine.high %v1519, %v1519
    %v1528 = vcombine.high %v1526, %v1526
    %v1529 = vrot.slane %v1519, 1
    %v1530 = vrot.slane %v1527, 1
    %v1531 = vrot.slane %v1526, 1
    %v1532 = vrot.slane %v1528, 1
    %v1541 = vadd.f32 %v1406, %v1519
    %v1542 = vadd.f32 %v1414, %v1529
    %v1543 = vadd.f32 %v1413, %v1527
    %v1544 = vadd.f32 %v1415, %v1530
    %v1545 = vadd.f32 %v1423, %v1526
    %v1546 = vadd.f32 %v1431, %v1531
    %v1547 = vadd.f32 %v1430, %v1528
    %v1548 = vadd.f32 %v1432, %v1532
    %v1549 = vxor.u32 %v1541, 2147483648
    %v1550 = vxor.u32 %v1542, 2147483648
    %v1551 = vxor.u32 %v1543, 2147483648
    %v1552 = vxor.u32 %v1544, 2147483648
    %v1553 = vxor.u32 %v1545, 2147483648
    %v1554 = vxor.u32 %v1546, 2147483648
    %v1555 = vxor.u32 %v1547, 2147483648
    %v1556 = vxor.u32 %v1548, 2147483648
    %v1557 = vmul.f32 %v1549, 1.442695
    %v1558 = vpow.pop %v1557
    %v1559 = vmul.f32 %v1550, 1.442695
    %v1560 = vpow.pop %v1559
    %v1561 = vmul.f32 %v1551, 1.442695
    %v1562 = vpow.pop %v1561
    %v1563 = vmul.f32 %v1552, 1.442695
    %v1564 = vpow.pop %v1563
    %v1565 = vmul.f32 %v1553, 1.442695
    %v1566 = vpow.pop %v1565
    %v1567 = vmul.f32 %v1554, 1.442695
    %v1568 = vpow.pop %v1567
    %v1569 = vmul.f32 %v1555, 1.442695
    %v1570 = vpow.pop %v1569
    %v1571 = vmul.f32 %v1556, 1.442695
    %v1572 = vpow.pop %v1571
    %v1573 = vadd.f32 %v1558, 1.0
    %v1574 = vadd.f32 %v1560, 1.0
    %v1575 = vadd.f32 %v1562, 1.0
    %v1576 = vadd.f32 %v1564, 1.0
    %v1577 = vadd.f32 %v1566, 1.0
    %v1578 = vadd.f32 %v1568, 1.0
    %v1579 = vadd.f32 %v1570, 1.0
    %v1580 = vadd.f32 %v1572, 1.0
    %v1581 = vrcp.pop %v1573
    %v1582 = vmul.f32 1.0, %v1581
    %v1583 = vrcp.pop %v1574
    %v1584 = vmul.f32 1.0, %v1583
    %v1585 = vrcp.pop %v1575
    %v1586 = vmul.f32 1.0, %v1585
    %v1587 = vrcp.pop %v1576
    %v1588 = vmul.f32 1.0, %v1587
    %v1589 = vrcp.pop %v1577
    %v1590 = vmul.f32 1.0, %v1589
    %v1591 = vrcp.pop %v1578
    %v1592 = vmul.f32 1.0, %v1591
    %v1593 = vrcp.pop %v1579
    %v1594 = vmul.f32 1.0, %v1593
    %v1595 = vrcp.pop %v1580
    %v1596 = vmul.f32 1.0, %v1595
    %v1597 = vtanh.pop %v1541
    %v1598 = vtanh.pop %v1542
    %v1599 = vtanh.pop %v1543
    %v1600 = vtanh.pop %v1544
    %v1601 = vtanh.pop %v1545
    %v1602 = vtanh.pop %v1546
    %v1603 = vtanh.pop %v1547
    %v1604 = vtanh.pop %v1548
    %v1605 = vmul.f32 %v1582, 0.0
    %v1606 = vmul.f32 %v1584, 0.0
    %v1607 = vmul.f32 %v1586, 0.0
    %v1608 = vmul.f32 %v1588, 0.0
    %v1609 = vmul.f32 %v1590, 0.0
    %v1610 = vmul.f32 %v1592, 0.0
    %v1611 = vmul.f32 %v1594, 0.0
    %v1612 = vmul.f32 %v1596, 0.0
    %1621 = vrot.lane.b32.xlu0 %v1597, 64
    %v1622 = vpop.permute.xlu0 %1621
    %1623 = vrot.lane.b32.xlu0 %v1598, 64
    %v1624 = vpop.permute.xlu0 %1623
    %1625 = vrot.lane.b32.xlu0 %v1599, 64
    %v1626 = vpop.permute.xlu0 %1625
    %1627 = vrot.lane.b32.xlu0 %v1600, 64
    %v1628 = vpop.permute.xlu0 %1627
    %1629 = vrot.lane.b32.xlu0 %v1601, 64
    %v1630 = vpop.permute.xlu0 %1629
    %1631 = vrot.lane.b32.xlu0 %v1602, 64
    %v1632 = vpop.permute.xlu0 %1631
    %1633 = vrot.lane.b32.xlu0 %v1603, 64
    %v1634 = vpop.permute.xlu0 %1633
    %1635 = vrot.lane.b32.xlu0 %v1604, 64
    %v1636 = vpop.permute.xlu0 %1635
    %v1645 = vmul.f32 %v1582, %v1622
    %v1646 = vmul.f32 %v1584, %v1624
    %v1647 = vmul.f32 %v1586, %v1626
    %v1648 = vmul.f32 %v1588, %v1628
    %v1649 = vmul.f32 %v1590, %v1630
    %v1650 = vmul.f32 %v1592, %v1632
    %v1651 = vmul.f32 %v1594, %v1634
    %v1652 = vmul.f32 %v1596, %v1636
    %1661 = vrot.lane.b32.xlu0 %v1645, 32
    %v1662 = vpop.permute.xlu0 %1661
    %1663 = vrot.lane.b32.xlu0 %v1646, 32
    %v1664 = vpop.permute.xlu0 %1663
    %1665 = vrot.lane.b32.xlu0 %v1647, 32
    %v1666 = vpop.permute.xlu0 %1665
    %1667 = vrot.lane.b32.xlu0 %v1648, 32
    %v1668 = vpop.permute.xlu0 %1667
    %1669 = vrot.lane.b32.xlu0 %v1649, 32
    %v1670 = vpop.permute.xlu0 %1669
    %1671 = vrot.lane.b32.xlu0 %v1650, 32
    %v1672 = vpop.permute.xlu0 %1671
    %1673 = vrot.lane.b32.xlu0 %v1651, 32
    %v1674 = vpop.permute.xlu0 %1673
    %1675 = vrot.lane.b32.xlu0 %v1652, 32
    %v1676 = vpop.permute.xlu0 %1675
    %v1685 = vadd.f32 %v1605, %v1662
    %v1686 = vadd.f32 %v1606, %v1664
    %v1687 = vadd.f32 %v1607, %v1666
    %v1688 = vadd.f32 %v1608, %v1668
    %v1689 = vadd.f32 %v1609, %v1670
    %v1690 = vadd.f32 %v1610, %v1672
    %v1691 = vadd.f32 %v1611, %v1674
    %v1692 = vadd.f32 %v1612, %v1676
    %v1693 = vtanh.pop %v1685
    %v1694 = vtanh.pop %v1686
    %v1695 = vtanh.pop %v1687
    %v1696 = vtanh.pop %v1688
    %v1697 = vtanh.pop %v1689
    %v1698 = vtanh.pop %v1690
    %v1699 = vtanh.pop %v1691
    %v1700 = vtanh.pop %v1692
    %1709 = vrot.lane.b32.xlu0 %v1693, 64
    %v1710 = vpop.permute.xlu0 %1709
    %1711 = vrot.lane.b32.xlu0 %v1694, 64
    %v1712 = vpop.permute.xlu0 %1711
    %1713 = vrot.lane.b32.xlu0 %v1695, 64
    %v1714 = vpop.permute.xlu0 %1713
    %1715 = vrot.lane.b32.xlu0 %v1696, 64
    %v1716 = vpop.permute.xlu0 %1715
    %1717 = vrot.lane.b32.xlu0 %v1697, 64
    %v1718 = vpop.permute.xlu0 %1717
    %1719 = vrot.lane.b32.xlu0 %v1698, 64
    %v1720 = vpop.permute.xlu0 %1719
    %1721 = vrot.lane.b32.xlu0 %v1699, 64
    %v1722 = vpop.permute.xlu0 %1721
    %1723 = vrot.lane.b32.xlu0 %v1700, 64
    %v1724 = vpop.permute.xlu0 %1723
    %v1733 = vmul.f32 %v1582, %v1710
    %v1734 = vmul.f32 %v1584, %v1712
    %v1735 = vmul.f32 %v1586, %v1714
    %v1736 = vmul.f32 %v1588, %v1716
    %v1737 = vmul.f32 %v1590, %v1718
    %v1738 = vmul.f32 %v1592, %v1720
    %v1739 = vmul.f32 %v1594, %v1722
    %v1740 = vmul.f32 %v1596, %v1724
    %v1749 = vlaneseq
    %v1750 = vshrl.u32 %v1749, 7
    %v1751 = vsub.s32 0, %v1750
    %v1752 = vrot.slane %v1733, %v1751
    %v1753 = vlaneseq
    %v1754 = vshrl.u32 %v1753, 7
    %v1755 = vsub.s32 0, %v1754
    %v1756 = vrot.slane %v1734, %v1755
    %v1757 = vlaneseq
    %v1758 = vshrl.u32 %v1757, 7
    %v1759 = vsub.s32 0, %v1758
    %v1760 = vrot.slane %v1735, %v1759
    %v1761 = vlaneseq
    %v1762 = vshrl.u32 %v1761, 7
    %v1763 = vsub.s32 0, %v1762
    %v1764 = vrot.slane %v1736, %v1763
    %v1765 = vlaneseq
    %v1766 = vshrl.u32 %v1765, 7
    %v1767 = vsub.s32 0, %v1766
    %v1768 = vrot.slane %v1737, %v1767
    %v1769 = vlaneseq
    %v1770 = vshrl.u32 %v1769, 7
    %v1771 = vsub.s32 0, %v1770
    %v1772 = vrot.slane %v1738, %v1771
    %v1773 = vlaneseq
    %v1774 = vshrl.u32 %v1773, 7
    %v1775 = vsub.s32 0, %v1774
    %v1776 = vrot.slane %v1739, %v1775
    %v1777 = vlaneseq
    %v1778 = vshrl.u32 %v1777, 7
    %v1779 = vsub.s32 0, %v1778
    %v1780 = vrot.slane %v1740, %v1779
    %vm1781 = vcmask 1041409
    %v1782 = vsel %vm1781, %v1756, %v1752
    %vm1783 = vcmask 1042434
    %v1784 = vsel %vm1783, %v1760, %v1782
    %vm1785 = vcmask 1043459
    %v1786 = vsel %vm1785, %v1764, %v1784
    %vm1787 = vcmask 1044484
    %v1788 = vsel %vm1787, %v1768, %v1786
    %vm1789 = vcmask 1045509
    %v1790 = vsel %vm1789, %v1772, %v1788
    %vm1791 = vcmask 1046534
    %v1792 = vsel %vm1791, %v1776, %v1790
    %vm1793 = vcmask 1047559
    %v1794 = vsel %vm1793, %v1780, %v1792
    %1795 = vrot.lane.b32.xlu0 %v1794, 32
    %v1796 = vpop.permute.xlu0 %1795
    %v1797 = vsel %vm350, %v1796, 0
    %1799 = vmatprep.subr.mxu0 0.0
    %1800 = vmatpush1.msra.mxu0 0.0
    %1801 = vmatprep.subr.mxu0 0.0
    %1802 = vmatpush1.msra.mxu0 0.0
    %1803 = vmatprep.subr.mxu0 0.0
    %1804 = vmatpush1.msra.mxu0 0.0
    %1805 = vmatprep.subr.mxu0 0.0
    %1806 = vmatpush1.msra.mxu0 0.0
    %1807 = vmatprep.subr.mxu0 0.0
    %1808 = vmatpush1.msra.mxu0 0.0
    %1809 = vmatprep.subr.mxu0 0.0
    %1810 = vmatpush1.msra.mxu0 0.0
    %1811 = vmatprep.subr.mxu0 0.0
    %1812 = vmatpush1.msra.mxu0 0.0
    %1813 = vmatprep.subr.mxu0 0.0
    %1814 = vmatpush1.msra.mxu0 0.0
    %1815 = vmatprep.subr.mxu0 0.0
    %1816 = vmatpush1.msra.mxu0 0.0
    %1817 = vmatprep.subr.mxu0 0.0
    %1818 = vmatpush1.msra.mxu0 0.0
    %1819 = vmatprep.subr.mxu0 0.0
    %1820 = vmatpush1.msra.mxu0 0.0
    %1821 = vmatprep.subr.mxu0 0.0
    %1822 = vmatpush1.msra.mxu0 0.0
    %1823 = vmatprep.subr.mxu0 0.0
    %1824 = vmatpush1.msra.mxu0 %v150
    %1825 = vmatprep.subr.mxu0 0.0
    %1826 = vmatpush1.msra.mxu0 %v149
    %1827 = vmatprep.subr.mxu0 0.0
    %1828 = vmatpush1.msra.mxu0 %v148
    %1829 = vmatprep.subr.mxu0 0.0
    %1830 = vmatpush1.msra.mxu0 %v147
    %1831 = vmatprep.subr.mxu0 0.0
    %1832 = vmatpush2.msra.mxu0 0.0
    %1833 = vmatprep.subr.mxu0 0.0
    %1834 = vmatpush2.msra.mxu0 0.0
    %1835 = vmatprep.subr.mxu0 0.0
    %1836 = vmatpush2.msra.mxu0 0.0
    %1837 = vmatprep.subr.mxu0 0.0
    %1838 = vmatpush2.msra.mxu0 0.0
    %1839 = vmatprep.subr.mxu0 0.0
    %1840 = vmatpush2.msra.mxu0 0.0
    %1841 = vmatprep.subr.mxu0 0.0
    %1842 = vmatpush2.msra.mxu0 0.0
    %1843 = vmatprep.subr.mxu0 0.0
    %1844 = vmatpush2.msra.mxu0 0.0
    %1845 = vmatprep.subr.mxu0 0.0
    %1846 = vmatpush2.msra.mxu0 0.0
    %1847 = vmatprep.subr.mxu0 0.0
    %1848 = vmatpush2.msra.mxu0 0.0
    %1849 = vmatprep.subr.mxu0 0.0
    %1850 = vmatpush2.msra.mxu0 0.0
    %1851 = vmatprep.subr.mxu0 0.0
    %1852 = vmatpush2.msra.mxu0 0.0
    %1853 = vmatprep.subr.mxu0 0.0
    %1854 = vmatpush2.msra.mxu0 0.0
    %1855 = vmatprep.subr.mxu0 0.0
    %1856 = vmatpush2.msra.mxu0 0.0
    %1857 = vmatprep.subr.mxu0 0.0
    %1858 = vmatpush2.msra.mxu0 0.0
    %1859 = vmatprep.subr.mxu0 0.0
    %1860 = vmatpush2.msra.mxu0 0.0
    %1861 = vmatprep.subr.mxu0 0.0
    %1862 = vmatpush2.msra.mxu0 0.0
    %1863 = vmatprep.mubr.f32.mxu0 0.0
    %1864 = vmatmul.mubr.f32.gmra.mxu0 %v1797
    %v1865 = vpop.f32.mrf.mxu0
    %v1866 = vadd.f32 0.0, %v1865
    %v1867 = vpop.f32.mrf.mxu0
    %1868 = vdwg.mxu0
    %v1870 = vcombine.high %v1866, %v1866
    %v1872 = vunpack.c.l.s4 1983009808
    %v1873 = vunpack.c.0.s8 %v1872
    %v1874 = vlaneseq
    %v1875 = vshrl.u32 %v1874, 7
    %v1876 = vsub.s32 %v1873, %v1875
    %v1877 = vrot.slane %v1866, %v1876
    %v1879 = vunpack.c.l.s4 1983009808
    %v1880 = vunpack.c.0.s8 %v1879
    %v1881 = vlaneseq
    %v1882 = vshrl.u32 %v1881, 7
    %v1883 = vsub.s32 %v1880, %v1882
    %v1884 = vrot.slane %v1870, %v1883
    %v1885 = vcombine.high %v1877, %v1877
    %v1886 = vcombine.high %v1884, %v1884
    %v1887 = vrot.slane %v1877, 7
    %v1888 = vrot.slane %v1885, 7
    %v1889 = vrot.slane %v1884, 7
    %v1890 = vrot.slane %v1886, 7
    %v1899 = vadd.f32 %v1406, %v1887
    %v1900 = vadd.f32 %v1414, %v1877
    %v1901 = vadd.f32 %v1413, %v1888
    %v1902 = vadd.f32 %v1415, %v1885
    %v1903 = vadd.f32 %v1423, %v1889
    %v1904 = vadd.f32 %v1431, %v1884
    %v1905 = vadd.f32 %v1430, %v1890
    %v1906 = vadd.f32 %v1432, %v1886
    %v1907 = vxor.u32 %v1899, 2147483648
    %v1908 = vxor.u32 %v1900, 2147483648
    %v1909 = vxor.u32 %v1901, 2147483648
    %v1910 = vxor.u32 %v1902, 2147483648
    %v1911 = vxor.u32 %v1903, 2147483648
    %v1912 = vxor.u32 %v1904, 2147483648
    %v1913 = vxor.u32 %v1905, 2147483648
    %v1914 = vxor.u32 %v1906, 2147483648
    %v1915 = vmul.f32 %v1907, 1.442695
    %v1916 = vpow.pop %v1915
    %v1917 = vmul.f32 %v1908, 1.442695
    %v1918 = vpow.pop %v1917
    %v1919 = vmul.f32 %v1909, 1.442695
    %v1920 = vpow.pop %v1919
    %v1921 = vmul.f32 %v1910, 1.442695
    %v1922 = vpow.pop %v1921
    %v1923 = vmul.f32 %v1911, 1.442695
    %v1924 = vpow.pop %v1923
    %v1925 = vmul.f32 %v1912, 1.442695
    %v1926 = vpow.pop %v1925
    %v1927 = vmul.f32 %v1913, 1.442695
    %v1928 = vpow.pop %v1927
    %v1929 = vmul.f32 %v1914, 1.442695
    %v1930 = vpow.pop %v1929
    %v1931 = vadd.f32 %v1916, 1.0
    %v1932 = vadd.f32 %v1918, 1.0
    %v1933 = vadd.f32 %v1920, 1.0
    %v1934 = vadd.f32 %v1922, 1.0
    %v1935 = vadd.f32 %v1924, 1.0
    %v1936 = vadd.f32 %v1926, 1.0
    %v1937 = vadd.f32 %v1928, 1.0
    %v1938 = vadd.f32 %v1930, 1.0
    %v1939 = vrcp.pop %v1931
    %v1940 = vmul.f32 1.0, %v1939
    %v1941 = vrcp.pop %v1932
    %v1942 = vmul.f32 1.0, %v1941
    %v1943 = vrcp.pop %v1933
    %v1944 = vmul.f32 1.0, %v1943
    %v1945 = vrcp.pop %v1934
    %v1946 = vmul.f32 1.0, %v1945
    %v1947 = vrcp.pop %v1935
    %v1948 = vmul.f32 1.0, %v1947
    %v1949 = vrcp.pop %v1936
    %v1950 = vmul.f32 1.0, %v1949
    %v1951 = vrcp.pop %v1937
    %v1952 = vmul.f32 1.0, %v1951
    %v1953 = vrcp.pop %v1938
    %v1954 = vmul.f32 1.0, %v1953
    %v1955 = vtanh.pop %v1899
    %v1956 = vtanh.pop %v1900
    %v1957 = vtanh.pop %v1901
    %v1958 = vtanh.pop %v1902
    %v1959 = vtanh.pop %v1903
    %v1960 = vtanh.pop %v1904
    %v1961 = vtanh.pop %v1905
    %v1962 = vtanh.pop %v1906
    %v1971 = vrot.slane %v1685, 7
    %v1972 = vrot.slane %v1686, 7
    %v1973 = vrot.slane %v1687, 7
    %v1974 = vrot.slane %v1688, 7
    %v1975 = vrot.slane %v1689, 7
    %v1976 = vrot.slane %v1690, 7
    %v1977 = vrot.slane %v1691, 7
    %v1978 = vrot.slane %v1692, 7
    %v1987 = vmul.f32 %v1940, %v1971
    %v1988 = vmul.f32 %v1942, %v1972
    %v1989 = vmul.f32 %v1944, %v1973
    %v1990 = vmul.f32 %v1946, %v1974
    %v1991 = vmul.f32 %v1948, %v1975
    %v1992 = vmul.f32 %v1950, %v1976
    %v1993 = vmul.f32 %v1952, %v1977
    %v1994 = vmul.f32 %v1954, %v1978
    %2003 = vrot.lane.b32.xlu0 %v1955, 64
    %v2004 = vpop.permute.xlu0 %2003
    %2005 = vrot.lane.b32.xlu0 %v1956, 64
    %v2006 = vpop.permute.xlu0 %2005
    %2007 = vrot.lane.b32.xlu0 %v1957, 64
    %v2008 = vpop.permute.xlu0 %2007
    %2009 = vrot.lane.b32.xlu0 %v1958, 64
    %v2010 = vpop.permute.xlu0 %2009
    %2011 = vrot.lane.b32.xlu0 %v1959, 64
    %v2012 = vpop.permute.xlu0 %2011
    %2013 = vrot.lane.b32.xlu0 %v1960, 64
    %v2014 = vpop.permute.xlu0 %2013
    %2015 = vrot.lane.b32.xlu0 %v1961, 64
    %v2016 = vpop.permute.xlu0 %2015
    %2017 = vrot.lane.b32.xlu0 %v1962, 64
    %v2018 = vpop.permute.xlu0 %2017
    %v2027 = vmul.f32 %v1940, %v2004
    %v2028 = vmul.f32 %v1942, %v2006
    %v2029 = vmul.f32 %v1944, %v2008
    %v2030 = vmul.f32 %v1946, %v2010
    %v2031 = vmul.f32 %v1948, %v2012
    %v2032 = vmul.f32 %v1950, %v2014
    %v2033 = vmul.f32 %v1952, %v2016
    %v2034 = vmul.f32 %v1954, %v2018
    %2043 = vrot.lane.b32.xlu0 %v2027, 32
    %v2044 = vpop.permute.xlu0 %2043
    %2045 = vrot.lane.b32.xlu0 %v2028, 32
    %v2046 = vpop.permute.xlu0 %2045
    %2047 = vrot.lane.b32.xlu0 %v2029, 32
    %v2048 = vpop.permute.xlu0 %2047
    %2049 = vrot.lane.b32.xlu0 %v2030, 32
    %v2050 = vpop.permute.xlu0 %2049
    %2051 = vrot.lane.b32.xlu0 %v2031, 32
    %v2052 = vpop.permute.xlu0 %2051
    %2053 = vrot.lane.b32.xlu0 %v2032, 32
    %v2054 = vpop.permute.xlu0 %2053
    %2055 = vrot.lane.b32.xlu0 %v2033, 32
    %v2056 = vpop.permute.xlu0 %2055
    %2057 = vrot.lane.b32.xlu0 %v2034, 32
    %v2058 = vpop.permute.xlu0 %2057
    %v2067 = vadd.f32 %v1987, %v2044
    %v2068 = vadd.f32 %v1988, %v2046
    %v2069 = vadd.f32 %v1989, %v2048
    %v2070 = vadd.f32 %v1990, %v2050
    %v2071 = vadd.f32 %v1991, %v2052
    %v2072 = vadd.f32 %v1992, %v2054
    %v2073 = vadd.f32 %v1993, %v2056
    %v2074 = vadd.f32 %v1994, %v2058
    %v2075 = vtanh.pop %v2067
    %v2076 = vtanh.pop %v2068
    %v2077 = vtanh.pop %v2069
    %v2078 = vtanh.pop %v2070
    %v2079 = vtanh.pop %v2071
    %v2080 = vtanh.pop %v2072
    %v2081 = vtanh.pop %v2073
    %v2082 = vtanh.pop %v2074
    %2091 = vrot.lane.b32.xlu0 %v2075, 64
    %v2092 = vpop.permute.xlu0 %2091
    %2093 = vrot.lane.b32.xlu0 %v2076, 64
    %v2094 = vpop.permute.xlu0 %2093
    %2095 = vrot.lane.b32.xlu0 %v2077, 64
    %v2096 = vpop.permute.xlu0 %2095
    %2097 = vrot.lane.b32.xlu0 %v2078, 64
    %v2098 = vpop.permute.xlu0 %2097
    %2099 = vrot.lane.b32.xlu0 %v2079, 64
    %v2100 = vpop.permute.xlu0 %2099
    %2101 = vrot.lane.b32.xlu0 %v2080, 64
    %v2102 = vpop.permute.xlu0 %2101
    %2103 = vrot.lane.b32.xlu0 %v2081, 64
    %v2104 = vpop.permute.xlu0 %2103
    %2105 = vrot.lane.b32.xlu0 %v2082, 64
    %v2106 = vpop.permute.xlu0 %2105
    %v2115 = vmul.f32 %v1940, %v2092
    %v2116 = vmul.f32 %v1942, %v2094
    %v2117 = vmul.f32 %v1944, %v2096
    %v2118 = vmul.f32 %v1946, %v2098
    %v2119 = vmul.f32 %v1948, %v2100
    %v2120 = vmul.f32 %v1950, %v2102
    %v2121 = vmul.f32 %v1952, %v2104
    %v2122 = vmul.f32 %v1954, %v2106
    %v2131 = vrot.slane %v2115, 7
    %v2132 = vrot.slane %v2131, 2
    %v2133 = vrot.slane %v2116, 7
    %v2134 = vrot.slane %v2133, 2
    %v2135 = vrot.slane %v2117, 7
    %v2136 = vrot.slane %v2135, 2
    %v2137 = vrot.slane %v2118, 7
    %v2138 = vrot.slane %v2137, 2
    %v2139 = vrot.slane %v2119, 7
    %v2140 = vrot.slane %v2139, 2
    %v2141 = vrot.slane %v2120, 7
    %v2142 = vrot.slane %v2141, 2
    %v2143 = vrot.slane %v2121, 7
    %v2144 = vrot.slane %v2143, 2
    %v2145 = vrot.slane %v2122, 7
    %v2146 = vrot.slane %v2145, 2
    %v2147 = vlaneseq
    %v2148 = vshrl.u32 %v2147, 7
    %v2149 = vsub.s32 0, %v2148
    %v2150 = vrot.slane %v2132, %v2149
    %v2151 = vlaneseq
    %v2152 = vshrl.u32 %v2151, 7
    %v2153 = vsub.s32 0, %v2152
    %v2154 = vrot.slane %v2134, %v2153
    %v2155 = vlaneseq
    %v2156 = vshrl.u32 %v2155, 7
    %v2157 = vsub.s32 0, %v2156
    %v2158 = vrot.slane %v2136, %v2157
    %v2159 = vlaneseq
    %v2160 = vshrl.u32 %v2159, 7
    %v2161 = vsub.s32 0, %v2160
    %v2162 = vrot.slane %v2138, %v2161
    %v2163 = vlaneseq
    %v2164 = vshrl.u32 %v2163, 7
    %v2165 = vsub.s32 0, %v2164
    %v2166 = vrot.slane %v2140, %v2165
    %v2167 = vlaneseq
    %v2168 = vshrl.u32 %v2167, 7
    %v2169 = vsub.s32 0, %v2168
    %v2170 = vrot.slane %v2142, %v2169
    %v2171 = vlaneseq
    %v2172 = vshrl.u32 %v2171, 7
    %v2173 = vsub.s32 0, %v2172
    %v2174 = vrot.slane %v2144, %v2173
    %v2175 = vlaneseq
    %v2176 = vshrl.u32 %v2175, 7
    %v2177 = vsub.s32 0, %v2176
    %v2178 = vrot.slane %v2146, %v2177
    %v2179 = vsel %vm1781, %v2154, %v2150
    %v2180 = vsel %vm1783, %v2158, %v2179
    %v2181 = vsel %vm1785, %v2162, %v2180
    %v2182 = vsel %vm1787, %v2166, %v2181
    %v2183 = vsel %vm1789, %v2170, %v2182
    %v2184 = vsel %vm1791, %v2174, %v2183
    %v2185 = vsel %vm1793, %v2178, %v2184
    %2186 = vrot.lane.b32.xlu0 %v2185, 32
    %v2187 = vpop.permute.xlu0 %2186
    %v2188 = vsel %vm350, %v2187, 0
    %2190 = vmatprep.subr.mxu0 0.0
    %2191 = vmatpush1.msra.mxu0 0.0
    %2192 = vmatprep.subr.mxu0 0.0
    %2193 = vmatpush1.msra.mxu0 0.0
    %2194 = vmatprep.subr.mxu0 0.0
    %2195 = vmatpush1.msra.mxu0 0.0
    %2196 = vmatprep.subr.mxu0 0.0
    %2197 = vmatpush1.msra.mxu0 0.0
    %2198 = vmatprep.subr.mxu0 0.0
    %2199 = vmatpush1.msra.mxu0 0.0
    %2200 = vmatprep.subr.mxu0 0.0
    %2201 = vmatpush1.msra.mxu0 0.0
    %2202 = vmatprep.subr.mxu0 0.0
    %2203 = vmatpush1.msra.mxu0 0.0
    %2204 = vmatprep.subr.mxu0 0.0
    %2205 = vmatpush1.msra.mxu0 0.0
    %2206 = vmatprep.subr.mxu0 0.0
    %2207 = vmatpush1.msra.mxu0 0.0
    %2208 = vmatprep.subr.mxu0 0.0
    %2209 = vmatpush1.msra.mxu0 0.0
    %2210 = vmatprep.subr.mxu0 0.0
    %2211 = vmatpush1.msra.mxu0 0.0
    %2212 = vmatprep.subr.mxu0 0.0
    %2213 = vmatpush1.msra.mxu0 0.0
    %2214 = vmatprep.subr.mxu0 0.0
    %2215 = vmatpush1.msra.mxu0 %v154
    %2216 = vmatprep.subr.mxu0 0.0
    %2217 = vmatpush1.msra.mxu0 %v153
    %2218 = vmatprep.subr.mxu0 0.0
    %2219 = vmatpush1.msra.mxu0 %v152
    %2220 = vmatprep.subr.mxu0 0.0
    %2221 = vmatpush1.msra.mxu0 %v151
    %2222 = vmatprep.subr.mxu0 0.0
    %2223 = vmatpush2.msra.mxu0 0.0
    %2224 = vmatprep.subr.mxu0 0.0
    %2225 = vmatpush2.msra.mxu0 0.0
    %2226 = vmatprep.subr.mxu0 0.0
    %2227 = vmatpush2.msra.mxu0 0.0
    %2228 = vmatprep.subr.mxu0 0.0
    %2229 = vmatpush2.msra.mxu0 0.0
    %2230 = vmatprep.subr.mxu0 0.0
    %2231 = vmatpush2.msra.mxu0 0.0
    %2232 = vmatprep.subr.mxu0 0.0
    %2233 = vmatpush2.msra.mxu0 0.0
    %2234 = vmatprep.subr.mxu0 0.0
    %2235 = vmatpush2.msra.mxu0 0.0
    %2236 = vmatprep.subr.mxu0 0.0
    %2237 = vmatpush2.msra.mxu0 0.0
    %2238 = vmatprep.subr.mxu0 0.0
    %2239 = vmatpush2.msra.mxu0 0.0
    %2240 = vmatprep.subr.mxu0 0.0
    %2241 = vmatpush2.msra.mxu0 0.0
    %2242 = vmatprep.subr.mxu0 0.0
    %2243 = vmatpush2.msra.mxu0 0.0
    %2244 = vmatprep.subr.mxu0 0.0
    %2245 = vmatpush2.msra.mxu0 0.0
    %2246 = vmatprep.subr.mxu0 0.0
    %2247 = vmatpush2.msra.mxu0 0.0
    %2248 = vmatprep.subr.mxu0 0.0
    %2249 = vmatpush2.msra.mxu0 0.0
    %2250 = vmatprep.subr.mxu0 0.0
    %2251 = vmatpush2.msra.mxu0 0.0
    %2252 = vmatprep.subr.mxu0 0.0
    %2253 = vmatpush2.msra.mxu0 0.0
    %2254 = vmatprep.mubr.f32.mxu0 0.0
    %2255 = vmatmul.mubr.f32.gmra.mxu0 %v1797
    %v2256 = vpop.f32.mrf.mxu0
    %v2257 = vadd.f32 0.0, %v2256
    %v2258 = vpop.f32.mrf.mxu0
    %2259 = vmatprep.mubr.f32.mxu0 0.0
    %2260 = vmatmul.mubr.f32.gmra.mxu0 %v2188
    %v2261 = vpop.f32.mrf.mxu0
    %v2262 = vadd.f32 0.0, %v2261
    %v2263 = vpop.f32.mrf.mxu0
    %2264 = vdwg.mxu0
    %v2266 = vsel %vm350, %v2257, 0
    %v2269 = vsel %vm350, %v2262, 0
    %2271 = vmatprep.subr.mxu0 0.0
    %2272 = vmatpush1.msra.mxu0 0.0
    %2273 = vmatprep.subr.mxu0 0.0
    %2274 = vmatpush1.msra.mxu0 0.0
    %2275 = vmatprep.subr.mxu0 0.0
    %2276 = vmatpush1.msra.mxu0 0.0
    %2277 = vmatprep.subr.mxu0 0.0
    %2278 = vmatpush1.msra.mxu0 0.0
    %2279 = vmatprep.subr.mxu0 0.0
    %2280 = vmatpush1.msra.mxu0 0.0
    %2281 = vmatprep.subr.mxu0 0.0
    %2282 = vmatpush1.msra.mxu0 0.0
    %2283 = vmatprep.subr.mxu0 0.0
    %2284 = vmatpush1.msra.mxu0 0.0
    %2285 = vmatprep.subr.mxu0 0.0
    %2286 = vmatpush1.msra.mxu0 0.0
    %2287 = vmatprep.subr.mxu0 0.0
    %2288 = vmatpush1.msra.mxu0 0.0
    %2289 = vmatprep.subr.mxu0 0.0
    %2290 = vmatpush1.msra.mxu0 0.0
    %2291 = vmatprep.subr.mxu0 0.0
    %2292 = vmatpush1.msra.mxu0 0.0
    %2293 = vmatprep.subr.mxu0 0.0
    %2294 = vmatpush1.msra.mxu0 0.0
    %2295 = vmatprep.subr.mxu0 0.0
    %2296 = vmatpush1.msra.mxu0 %v158
    %2297 = vmatprep.subr.mxu0 0.0
    %2298 = vmatpush1.msra.mxu0 %v157
    %2299 = vmatprep.subr.mxu0 0.0
    %2300 = vmatpush1.msra.mxu0 %v156
    %2301 = vmatprep.subr.mxu0 0.0
    %2302 = vmatpush1.msra.mxu0 %v155
    %2303 = vmatprep.subr.mxu0 0.0
    %2304 = vmatpush2.msra.mxu0 0.0
    %2305 = vmatprep.subr.mxu0 0.0
    %2306 = vmatpush2.msra.mxu0 0.0
    %2307 = vmatprep.subr.mxu0 0.0
    %2308 = vmatpush2.msra.mxu0 0.0
    %2309 = vmatprep.subr.mxu0 0.0
    %2310 = vmatpush2.msra.mxu0 0.0
    %2311 = vmatprep.subr.mxu0 0.0
    %2312 = vmatpush2.msra.mxu0 0.0
    %2313 = vmatprep.subr.mxu0 0.0
    %2314 = vmatpush2.msra.mxu0 0.0
    %2315 = vmatprep.subr.mxu0 0.0
    %2316 = vmatpush2.msra.mxu0 0.0
    %2317 = vmatprep.subr.mxu0 0.0
    %2318 = vmatpush2.msra.mxu0 0.0
    %2319 = vmatprep.subr.mxu0 0.0
    %2320 = vmatpush2.msra.mxu0 0.0
    %2321 = vmatprep.subr.mxu0 0.0
    %2322 = vmatpush2.msra.mxu0 0.0
    %2323 = vmatprep.subr.mxu0 0.0
    %2324 = vmatpush2.msra.mxu0 0.0
    %2325 = vmatprep.subr.mxu0 0.0
    %2326 = vmatpush2.msra.mxu0 0.0
    %2327 = vmatprep.subr.mxu0 0.0
    %2328 = vmatpush2.msra.mxu0 0.0
    %2329 = vmatprep.subr.mxu0 0.0
    %2330 = vmatpush2.msra.mxu0 0.0
    %2331 = vmatprep.subr.mxu0 0.0
    %2332 = vmatpush2.msra.mxu0 0.0
    %2333 = vmatprep.subr.mxu0 0.0
    %2334 = vmatpush2.msra.mxu0 0.0
    %2335 = vmatprep.mubr.f32.mxu0 0.0
    %2336 = vmatmul.mubr.f32.gmra.mxu0 %v2266
    %v2337 = vpop.f32.mrf.mxu0
    %v2338 = vadd.f32 0.0, %v2337
    %v2339 = vpop.f32.mrf.mxu0
    %2340 = vmatprep.mubr.f32.mxu0 0.0
    %2341 = vmatmul.mubr.f32.gmra.mxu0 %v2269
    %v2342 = vpop.f32.mrf.mxu0
    %v2343 = vadd.f32 0.0, %v2342
    %v2344 = vpop.f32.mrf.mxu0
    %2345 = vdwg.mxu0
    %2346 = vmatprep.subr.mxu0 0.0
    %2347 = vmatpush1.msra.mxu0 0.0
    %2348 = vmatprep.subr.mxu0 0.0
    %2349 = vmatpush1.msra.mxu0 0.0
    %2350 = vmatprep.subr.mxu0 0.0
    %2351 = vmatpush1.msra.mxu0 0.0
    %2352 = vmatprep.subr.mxu0 0.0
    %2353 = vmatpush1.msra.mxu0 0.0
    %2354 = vmatprep.subr.mxu0 0.0
    %2355 = vmatpush1.msra.mxu0 0.0
    %2356 = vmatprep.subr.mxu0 0.0
    %2357 = vmatpush1.msra.mxu0 0.0
    %2358 = vmatprep.subr.mxu0 0.0
    %2359 = vmatpush1.msra.mxu0 0.0
    %2360 = vmatprep.subr.mxu0 0.0
    %2361 = vmatpush1.msra.mxu0 0.0
    %2362 = vmatprep.subr.mxu0 0.0
    %2363 = vmatpush1.msra.mxu0 0.0
    %2364 = vmatprep.subr.mxu0 0.0
    %2365 = vmatpush1.msra.mxu0 0.0
    %2366 = vmatprep.subr.mxu0 0.0
    %2367 = vmatpush1.msra.mxu0 0.0
    %2368 = vmatprep.subr.mxu0 0.0
    %2369 = vmatpush1.msra.mxu0 0.0
    %2370 = vmatprep.subr.mxu0 0.0
    %2371 = vmatpush1.msra.mxu0 %v162
    %2372 = vmatprep.subr.mxu0 0.0
    %2373 = vmatpush1.msra.mxu0 %v161
    %2374 = vmatprep.subr.mxu0 0.0
    %2375 = vmatpush1.msra.mxu0 %v160
    %2376 = vmatprep.subr.mxu0 0.0
    %2377 = vmatpush1.msra.mxu0 %v159
    %2378 = vmatprep.subr.mxu0 0.0
    %2379 = vmatpush2.msra.mxu0 0.0
    %2380 = vmatprep.subr.mxu0 0.0
    %2381 = vmatpush2.msra.mxu0 0.0
    %2382 = vmatprep.subr.mxu0 0.0
    %2383 = vmatpush2.msra.mxu0 0.0
    %2384 = vmatprep.subr.mxu0 0.0
    %2385 = vmatpush2.msra.mxu0 0.0
    %2386 = vmatprep.subr.mxu0 0.0
    %2387 = vmatpush2.msra.mxu0 0.0
    %2388 = vmatprep.subr.mxu0 0.0
    %2389 = vmatpush2.msra.mxu0 0.0
    %2390 = vmatprep.subr.mxu0 0.0
    %2391 = vmatpush2.msra.mxu0 0.0
    %2392 = vmatprep.subr.mxu0 0.0
    %2393 = vmatpush2.msra.mxu0 0.0
    %2394 = vmatprep.subr.mxu0 0.0
    %2395 = vmatpush2.msra.mxu0 0.0
    %2396 = vmatprep.subr.mxu0 0.0
    %2397 = vmatpush2.msra.mxu0 0.0
    %2398 = vmatprep.subr.mxu0 0.0
    %2399 = vmatpush2.msra.mxu0 0.0
    %2400 = vmatprep.subr.mxu0 0.0
    %2401 = vmatpush2.msra.mxu0 0.0
    %2402 = vmatprep.subr.mxu0 0.0
    %2403 = vmatpush2.msra.mxu0 0.0
    %2404 = vmatprep.subr.mxu0 0.0
    %2405 = vmatpush2.msra.mxu0 0.0
    %2406 = vmatprep.subr.mxu0 0.0
    %2407 = vmatpush2.msra.mxu0 0.0
    %2408 = vmatprep.subr.mxu0 0.0
    %2409 = vmatpush2.msra.mxu0 0.0
    %2410 = vmatprep.mubr.f32.mxu0 0.0
    %2411 = vmatmul.mubr.f32.gmra.mxu0 %v352
    %v2412 = vpop.f32.mrf.mxu0
    %v2413 = vadd.f32 0.0, %v2412
    %v2414 = vpop.f32.mrf.mxu0
    %2415 = vdwg.mxu0
    %v2416 = vadd.f32 %v2338, %v2413
    %v2417 = vxor.u32 %v2416, 2147483648
    %v2418 = vmul.f32 %v2417, 1.442695
    %v2419 = vpow.pop %v2418
    %v2420 = vadd.f32 %v2419, 1.0
    %v2421 = vrcp.pop %v2420
    %v2422 = vmul.f32 1.0, %v2421
    %v2423 = vtanh.pop %v2416
    %v2424 = vmul.f32 %v2422, 0.0
    %2426 = vrot.lane.b32.xlu0 %v2423, 64
    %v2427 = vpop.permute.xlu0 %2426
    %v2429 = vmul.f32 %v2422, %v2427
    %2431 = vrot.lane.b32.xlu0 %v2429, 32
    %v2432 = vpop.permute.xlu0 %2431
    %v2434 = vadd.f32 %v2424, %v2432
    %v2435 = vtanh.pop %v2434
    %2437 = vrot.lane.b32.xlu0 %v2435, 64
    %v2438 = vpop.permute.xlu0 %2437
    %v2440 = vmul.f32 %v2422, %v2438
    %2442 = vrot.lane.b32.xlu0 %v2440, 32
    %v2443 = vpop.permute.xlu0 %2442
    %v2444 = vsel %vm350, %v2443, 0
    %2446 = vmatprep.subr.mxu0 0.0
    %2447 = vmatpush1.msra.mxu0 0.0
    %2448 = vmatprep.subr.mxu0 0.0
    %2449 = vmatpush1.msra.mxu0 0.0
    %2450 = vmatprep.subr.mxu0 0.0
    %2451 = vmatpush1.msra.mxu0 0.0
    %2452 = vmatprep.subr.mxu0 0.0
    %2453 = vmatpush1.msra.mxu0 0.0
    %2454 = vmatprep.subr.mxu0 0.0
    %2455 = vmatpush1.msra.mxu0 0.0
    %2456 = vmatprep.subr.mxu0 0.0
    %2457 = vmatpush1.msra.mxu0 0.0
    %2458 = vmatprep.subr.mxu0 0.0
    %2459 = vmatpush1.msra.mxu0 0.0
    %2460 = vmatprep.subr.mxu0 0.0
    %2461 = vmatpush1.msra.mxu0 0.0
    %2462 = vmatprep.subr.mxu0 0.0
    %2463 = vmatpush1.msra.mxu0 0.0
    %2464 = vmatprep.subr.mxu0 0.0
    %2465 = vmatpush1.msra.mxu0 0.0
    %2466 = vmatprep.subr.mxu0 0.0
    %2467 = vmatpush1.msra.mxu0 0.0
    %2468 = vmatprep.subr.mxu0 0.0
    %2469 = vmatpush1.msra.mxu0 0.0
    %2470 = vmatprep.subr.mxu0 0.0
    %2471 = vmatpush1.msra.mxu0 %v162
    %2472 = vmatprep.subr.mxu0 0.0
    %2473 = vmatpush1.msra.mxu0 %v161
    %2474 = vmatprep.subr.mxu0 0.0
    %2475 = vmatpush1.msra.mxu0 %v160
    %2476 = vmatprep.subr.mxu0 0.0
    %2477 = vmatpush1.msra.mxu0 %v159
    %2478 = vmatprep.subr.mxu0 0.0
    %2479 = vmatpush2.msra.mxu0 0.0
    %2480 = vmatprep.subr.mxu0 0.0
    %2481 = vmatpush2.msra.mxu0 0.0
    %2482 = vmatprep.subr.mxu0 0.0
    %2483 = vmatpush2.msra.mxu0 0.0
    %2484 = vmatprep.subr.mxu0 0.0
    %2485 = vmatpush2.msra.mxu0 0.0
    %2486 = vmatprep.subr.mxu0 0.0
    %2487 = vmatpush2.msra.mxu0 0.0
    %2488 = vmatprep.subr.mxu0 0.0
    %2489 = vmatpush2.msra.mxu0 0.0
    %2490 = vmatprep.subr.mxu0 0.0
    %2491 = vmatpush2.msra.mxu0 0.0
    %2492 = vmatprep.subr.mxu0 0.0
    %2493 = vmatpush2.msra.mxu0 0.0
    %2494 = vmatprep.subr.mxu0 0.0
    %2495 = vmatpush2.msra.mxu0 0.0
    %2496 = vmatprep.subr.mxu0 0.0
    %2497 = vmatpush2.msra.mxu0 0.0
    %2498 = vmatprep.subr.mxu0 0.0
    %2499 = vmatpush2.msra.mxu0 0.0
    %2500 = vmatprep.subr.mxu0 0.0
    %2501 = vmatpush2.msra.mxu0 0.0
    %2502 = vmatprep.subr.mxu0 0.0
    %2503 = vmatpush2.msra.mxu0 0.0
    %2504 = vmatprep.subr.mxu0 0.0
    %2505 = vmatpush2.msra.mxu0 0.0
    %2506 = vmatprep.subr.mxu0 0.0
    %2507 = vmatpush2.msra.mxu0 0.0
    %2508 = vmatprep.subr.mxu0 0.0
    %2509 = vmatpush2.msra.mxu0 0.0
    %2510 = vmatprep.mubr.f32.mxu0 0.0
    %2511 = vmatmul.mubr.f32.gmra.mxu0 %v2444
    %v2512 = vpop.f32.mrf.mxu0
    %v2513 = vadd.f32 0.0, %v2512
    %v2514 = vpop.f32.mrf.mxu0
    %2515 = vdwg.mxu0
    %v2516 = vadd.f32 %v2343, %v2513
    %v2517 = vxor.u32 %v2516, 2147483648
    %v2518 = vmul.f32 %v2517, 1.442695
    %v2519 = vpow.pop %v2518
    %v2520 = vadd.f32 %v2519, 1.0
    %v2521 = vrcp.pop %v2520
    %v2522 = vmul.f32 1.0, %v2521
    %v2523 = vtanh.pop %v2516
    %v2524 = vmul.f32 %v2522, %v2434
    %2526 = vrot.lane.b32.xlu0 %v2523, 64
    %v2527 = vpop.permute.xlu0 %2526
    %v2529 = vmul.f32 %v2522, %v2527
    %2531 = vrot.lane.b32.xlu0 %v2529, 32
    %v2532 = vpop.permute.xlu0 %2531
    %v2534 = vadd.f32 %v2524, %v2532
    %v2535 = vtanh.pop %v2534
    %2537 = vrot.lane.b32.xlu0 %v2535, 64
    %v2538 = vpop.permute.xlu0 %2537
    %v2540 = vmul.f32 %v2522, %v2538
    %2542 = vrot.lane.b32.xlu0 %v2540, 32
    %v2543 = vpop.permute.xlu0 %2542
    %v2544 = vsel %vm350, %v2543, 0
    %2546 = vmatprep.subr.mxu0 0.0
    %2547 = vmatpush1.msra.mxu0 0.0
    %2548 = vmatprep.subr.mxu0 0.0
    %2549 = vmatpush1.msra.mxu0 0.0
    %2550 = vmatprep.subr.mxu0 0.0
    %2551 = vmatpush1.msra.mxu0 0.0
    %2552 = vmatprep.subr.mxu0 0.0
    %2553 = vmatpush1.msra.mxu0 0.0
    %2554 = vmatprep.subr.mxu0 0.0
    %2555 = vmatpush1.msra.mxu0 0.0
    %2556 = vmatprep.subr.mxu0 0.0
    %2557 = vmatpush1.msra.mxu0 0.0
    %2558 = vmatprep.subr.mxu0 0.0
    %2559 = vmatpush1.msra.mxu0 0.0
    %2560 = vmatprep.subr.mxu0 0.0
    %2561 = vmatpush1.msra.mxu0 0.0
    %2562 = vmatprep.subr.mxu0 0.0
    %2563 = vmatpush1.msra.mxu0 0.0
    %2564 = vmatprep.subr.mxu0 0.0
    %2565 = vmatpush1.msra.mxu0 0.0
    %2566 = vmatprep.subr.mxu0 0.0
    %2567 = vmatpush1.msra.mxu0 0.0
    %2568 = vmatprep.subr.mxu0 0.0
    %2569 = vmatpush1.msra.mxu0 0.0
    %2570 = vmatprep.subr.mxu0 0.0
    %2571 = vmatpush1.msra.mxu0 %v166
    %2572 = vmatprep.subr.mxu0 0.0
    %2573 = vmatpush1.msra.mxu0 %v165
    %2574 = vmatprep.subr.mxu0 0.0
    %2575 = vmatpush1.msra.mxu0 %v164
    %2576 = vmatprep.subr.mxu0 0.0
    %2577 = vmatpush1.msra.mxu0 %v163
    %2578 = vmatprep.subr.mxu0 0.0
    %2579 = vmatpush2.msra.mxu0 0.0
    %2580 = vmatprep.subr.mxu0 0.0
    %2581 = vmatpush2.msra.mxu0 0.0
    %2582 = vmatprep.subr.mxu0 0.0
    %2583 = vmatpush2.msra.mxu0 0.0
    %2584 = vmatprep.subr.mxu0 0.0
    %2585 = vmatpush2.msra.mxu0 0.0
    %2586 = vmatprep.subr.mxu0 0.0
    %2587 = vmatpush2.msra.mxu0 0.0
    %2588 = vmatprep.subr.mxu0 0.0
    %2589 = vmatpush2.msra.mxu0 0.0
    %2590 = vmatprep.subr.mxu0 0.0
    %2591 = vmatpush2.msra.mxu0 0.0
    %2592 = vmatprep.subr.mxu0 0.0
    %2593 = vmatpush2.msra.mxu0 0.0
    %2594 = vmatprep.subr.mxu0 0.0
    %2595 = vmatpush2.msra.mxu0 0.0
    %2596 = vmatprep.subr.mxu0 0.0
    %2597 = vmatpush2.msra.mxu0 0.0
    %2598 = vmatprep.subr.mxu0 0.0
    %2599 = vmatpush2.msra.mxu0 0.0
    %2600 = vmatprep.subr.mxu0 0.0
    %2601 = vmatpush2.msra.mxu0 0.0
    %2602 = vmatprep.subr.mxu0 0.0
    %2603 = vmatpush2.msra.mxu0 0.0
    %2604 = vmatprep.subr.mxu0 0.0
    %2605 = vmatpush2.msra.mxu0 0.0
    %2606 = vmatprep.subr.mxu0 0.0
    %2607 = vmatpush2.msra.mxu0 0.0
    %2608 = vmatprep.subr.mxu0 0.0
    %2609 = vmatpush2.msra.mxu0 0.0
    %2610 = vmatprep.mubr.f32.mxu0 0.0
    %2611 = vmatmul.mubr.f32.gmra.mxu0 %v2444
    %v2612 = vpop.f32.mrf.mxu0
    %v2613 = vadd.f32 0.0, %v2612
    %v2614 = vpop.f32.mrf.mxu0
    %2615 = vmatprep.mubr.f32.mxu0 0.0
    %2616 = vmatmul.mubr.f32.gmra.mxu0 %v2544
    %v2617 = vpop.f32.mrf.mxu0
    %v2618 = vadd.f32 0.0, %v2617
    %v2619 = vpop.f32.mrf.mxu0
    %2620 = vdwg.mxu0
    %v2622 = vlaneseq
    %v2623 = vshrl.u32 %v2622, 7
    %v2624 = vsub.s32 0, %v2623
    %v2625 = vrot.slane %v171, %v2624
    %v2628 = vsel %vm350, %v2613, 0
    %v2631 = vsel %vm350, %v2618, 0
    %2633 = vmatprep.subr.mxu0 0.0
    %2634 = vmatpush1.msra.mxu0 0.0
    %2635 = vmatprep.subr.mxu0 0.0
    %2636 = vmatpush1.msra.mxu0 0.0
    %2637 = vmatprep.subr.mxu0 0.0
    %2638 = vmatpush1.msra.mxu0 0.0
    %2639 = vmatprep.subr.mxu0 0.0
    %2640 = vmatpush1.msra.mxu0 0.0
    %2641 = vmatprep.subr.mxu0 0.0
    %2642 = vmatpush1.msra.mxu0 0.0
    %2643 = vmatprep.subr.mxu0 0.0
    %2644 = vmatpush1.msra.mxu0 0.0
    %2645 = vmatprep.subr.mxu0 0.0
    %2646 = vmatpush1.msra.mxu0 0.0
    %2647 = vmatprep.subr.mxu0 0.0
    %2648 = vmatpush1.msra.mxu0 0.0
    %2649 = vmatprep.subr.mxu0 0.0
    %2650 = vmatpush1.msra.mxu0 0.0
    %2651 = vmatprep.subr.mxu0 0.0
    %2652 = vmatpush1.msra.mxu0 0.0
    %2653 = vmatprep.subr.mxu0 0.0
    %2654 = vmatpush1.msra.mxu0 0.0
    %2655 = vmatprep.subr.mxu0 0.0
    %2656 = vmatpush1.msra.mxu0 0.0
    %2657 = vmatprep.subr.mxu0 0.0
    %2658 = vmatpush1.msra.mxu0 %v170
    %2659 = vmatprep.subr.mxu0 0.0
    %2660 = vmatpush1.msra.mxu0 %v169
    %2661 = vmatprep.subr.mxu0 0.0
    %2662 = vmatpush1.msra.mxu0 %v168
    %2663 = vmatprep.subr.mxu0 0.0
    %2664 = vmatpush1.msra.mxu0 %v167
    %2665 = vmatprep.subr.mxu0 0.0
    %2666 = vmatpush2.msra.mxu0 0.0
    %2667 = vmatprep.subr.mxu0 0.0
    %2668 = vmatpush2.msra.mxu0 0.0
    %2669 = vmatprep.subr.mxu0 0.0
    %2670 = vmatpush2.msra.mxu0 0.0
    %2671 = vmatprep.subr.mxu0 0.0
    %2672 = vmatpush2.msra.mxu0 0.0
    %2673 = vmatprep.subr.mxu0 0.0
    %2674 = vmatpush2.msra.mxu0 0.0
    %2675 = vmatprep.subr.mxu0 0.0
    %2676 = vmatpush2.msra.mxu0 0.0
    %2677 = vmatprep.subr.mxu0 0.0
    %2678 = vmatpush2.msra.mxu0 0.0
    %2679 = vmatprep.subr.mxu0 0.0
    %2680 = vmatpush2.msra.mxu0 0.0
    %2681 = vmatprep.subr.mxu0 0.0
    %2682 = vmatpush2.msra.mxu0 0.0
    %2683 = vmatprep.subr.mxu0 0.0
    %2684 = vmatpush2.msra.mxu0 0.0
    %2685 = vmatprep.subr.mxu0 0.0
    %2686 = vmatpush2.msra.mxu0 0.0
    %2687 = vmatprep.subr.mxu0 0.0
    %2688 = vmatpush2.msra.mxu0 0.0
    %2689 = vmatprep.subr.mxu0 0.0
    %2690 = vmatpush2.msra.mxu0 0.0
    %2691 = vmatprep.subr.mxu0 0.0
    %2692 = vmatpush2.msra.mxu0 0.0
    %2693 = vmatprep.subr.mxu0 0.0
    %2694 = vmatpush2.msra.mxu0 0.0
    %2695 = vmatprep.subr.mxu0 0.0
    %2696 = vmatpush2.msra.mxu0 0.0
    %2697 = vmatprep.mubr.f32.mxu0 0.0
    %2698 = vmatmul.mubr.f32.gmra.mxu0 %v2628
    %v2699 = vpop.f32.mrf.mxu0
    %v2700 = vadd.f32 %v2625, %v2699
    %v2701 = vpop.f32.mrf.mxu0
    %2702 = vmatprep.mubr.f32.mxu0 0.0
    %2703 = vmatmul.mubr.f32.gmra.mxu0 %v2631
    %v2704 = vpop.f32.mrf.mxu0
    %v2705 = vadd.f32 %v2625, %v2704
    %v2706 = vpop.f32.mrf.mxu0
    %2707 = vdwg.mxu0
    %vm2708 = vcmask 23552
    %2709 = vst.msk [vmem:[%s12] sm:$0xff] %vm2708, %v2700
    %2710 = vst.msk [vmem:[%s12 + $0x8] sm:$0xff] %vm2708, %v2705
    // Predicated region
    $region78: #{linear_combo_lstm_forward.1} parent=1 // pred_check
      _
    $region79: #{linear_combo_lstm_forward.1} parent=1 // pred_check_branch
      %2712 = sbr.rel (0) target = $region81
    $region80: #{linear_combo_lstm_forward.1} parent=1 // pred_region
      _
    $region81: #{linear_combo_lstm_forward.1} parent=1 // pred_fallthru
      _
    // Predicated region
    $region82: #{linear_combo_lstm_forward.1} parent=1 // pred_check
      _
    $region83: #{linear_combo_lstm_forward.1} parent=1 // pred_check_branch
      %2714 = sbr.rel (0) target = $region85
    $region84: #{linear_combo_lstm_forward.1} parent=1 // pred_region
      _
    $region85: #{linear_combo_lstm_forward.1} parent=1 // pred_fallthru
      _
    %2715 = vsyncpa [#allocation3], 1
    %2716 = vsyncpa [#allocation5], 1
    %2717 = vsyncpa [#allocation8], 1
    %2718 = vsyncpa [#allocation11], 1

</llo_original>
